<compile_context>
chip_gen: v5e
topology: v5e:2x2
jax: 0.10.0
libtpu: 0.0.40
codegen_flags: <defaults>
</compile_context>

<pallas_src>
import functools

import jax
import jax.numpy as jnp
from jax.experimental import pallas as pl
from jax.experimental.pallas import tpu as pltpu


# --------------------------------------------------------------------------------------
# Dense (matmul + bias) kernel: one big MXU-friendly GEMM, used for both the hoisted
# input->gates precompute and the deferred output projection.
# --------------------------------------------------------------------------------------
def _dense_kernel(x_ref, w_ref, b_ref, o_ref):
    o_ref[...] = (jnp.dot(x_ref[...], w_ref[...], preferred_element_type=jnp.float32)
                  + b_ref[...])


def _dense(x2d, w_t, bias_row, row_block=256):
    """(M, K) @ (K, N) + (1, N) -> (M, N), row-tiled over M.

    K and N stay whole (they are small here: K in {D, H}, N in {4H, L}); M (= T*B rows)
    is the long axis, so it carries the tiling and the "parallel" megacore sharding.
    Rows are zero-padded up to the row block so arbitrary M still row-tiles.
    """
    M, K = x2d.shape
    N = w_t.shape[1]
    rb = max(1, min(row_block, M))
    Mp = pl.cdiv(M, rb) * rb
    x_p = jnp.pad(x2d, ((0, Mp - M), (0, 0))) if Mp != M else x2d

    out = pl.pallas_call(
        _dense_kernel,
        out_shape=jax.ShapeDtypeStruct((Mp, N), jnp.float32),
        grid_spec=pltpu.PrefetchScalarGridSpec(
            num_scalar_prefetch=0,
            grid=(Mp // rb,),
            in_specs=[
                pl.BlockSpec((rb, K), lambda i: (i, 0)),
                pl.BlockSpec((K, N), lambda i: (0, 0)),    # grid-constant weight
                pl.BlockSpec((1, N), lambda i: (0, 0)),    # grid-constant bias row
            ],
            out_specs=pl.BlockSpec((rb, N), lambda i: (i, 0)),
        ),
        compiler_params=pltpu.CompilerParams(
            dimension_semantics=("parallel",),
        ),
    )(x_p, w_t, bias_row)
    return out if Mp == M else out[:M]


# --------------------------------------------------------------------------------------
# Recurrent kernel: one grid step = `chunk` time steps.
# --------------------------------------------------------------------------------------
def _lstm_recurrent_kernel(gx_ref, whh_ref, h_out_ref, h_scr, c_scr, *,
                           hidden_size, chunk, unroll):
    """gx_ref:    (chunk, B, 4H) precomputed x@W_ih^T + (b_ih+b_hh) for this time chunk
       whh_ref:   (H, 4H)        hidden->gates weights (pre-transposed); grid-constant
       h_out_ref: (chunk, B, H)  per-step hidden states (lane width H, not L)
       h_scr/c_scr: (B, H)       VMEM carries across grid steps
    """
    H = hidden_size
    t_chunk = pl.program_id(0)

    @pl.when(t_chunk == 0)
    def _init():
        h_scr[...] = jnp.zeros_like(h_scr)
        c_scr[...] = jnp.zeros_like(c_scr)

    # Load the grid-constant recurrent weight once per chunk, outside the step loop.
    # NOTE: for very large H on v7x (64 MiB VMEM), single-buffer this operand
    # (pipeline_mode=pl.Buffered(1)) and/or tile its 4H axis.
    whh = whh_ref[...]

    def step(s, carry):
        h_prev, c_prev = carry
        # Only the hidden->gates matmul remains in the recurrence; the bias is already
        # folded into gx, so there is no per-step broadcast.
        gates = gx_ref[s] + jnp.dot(h_prev, whh, preferred_element_type=jnp.float32)
        # PyTorch gate order: i, f, g, o.  (For H a multiple of 128 these slices are
        # vreg-aligned; for small H the intra-vreg slices are cheap.)
        i_g = jax.nn.sigmoid(gates[:, 0 * H:1 * H])
        f_g = jax.nn.sigmoid(gates[:, 1 * H:2 * H])
        g_g = jnp.tanh(gates[:, 2 * H:3 * H])
        o_g = jax.nn.sigmoid(gates[:, 3 * H:4 * H])
        c_new = f_g * c_prev + i_g * g_g
        h_new = o_g * jnp.tanh(c_new)
        h_out_ref[s] = h_new
        return h_new, c_new

    h_fin, c_fin = jax.lax.fori_loop(0, chunk, step,
                                     (h_scr[...], c_scr[...]), unroll=unroll)
    h_scr[...] = h_fin
    c_scr[...] = c_fin


def _pick_time_chunk(T, B, H, preferred=None, vmem_budget_bytes=4 << 20):
    """Largest divisor of T that (double-buffered) fits the VMEM budget and <= preferred."""
    # Per time step of a chunk (input + output blocks, each double-buffered by Pallas):
    per_step_bytes = 2 * (B * 4 * H + B * H) * 4
    cap = max(1, vmem_budget_bytes // max(per_step_bytes, 1))
    if preferred is None:
        preferred = min(T, 32)          # keep the fully-unrolled inner loop modest
    preferred = max(1, min(preferred, T, cap))
    for c in range(preferred, 0, -1):
        if T % c == 0:
            return c
    return 1


def lstm_class_forward(x, params, time_chunk=None):
    """x: (B, T, D) float32 (batch_first, as in the PyTorch module). Returns (B, T, L)."""
    B, T, D = x.shape
    w_ih, w_hh, b_ih, b_hh, w3, b3 = (
        params["w_ih"], params["w_hh"], params["b_ih"], params["b_hh"],
        params["w3"], params["b3"])
    H = w_hh.shape[1]
    L = w3.shape[0]
    chunk = _pick_time_chunk(T, B, H, time_chunk)
    unroll = chunk <= 32   # fully unroll short chunks for LLO scheduling visibility

    # Glue (narrow tensors only): time-major x, pre-transposed weights, fused bias.
    # TODO(synk): on v6e/v7x cast whh_t / h to bfloat16 with f32 accumulation for the
    # bf16-native MXU; kept f32 here so the 1e-4 reference check holds.
    x_tm = jnp.transpose(x, (1, 0, 2)).reshape(T * B, D)   # (T*B, D), D is narrow
    wih_t = jnp.transpose(w_ih)                            # (D, 4H)
    whh_t = jnp.transpose(w_hh)                            # (H, 4H)
    b_all = (b_ih + b_hh).reshape(1, 4 * H)                # (1, 4H)
    wout_t = jnp.transpose(w3)                             # (H, L)
    bout = b3.reshape(1, L)                                # (1, L)

    # (1) Hoisted input->gates GEMM over all T*B rows (bias folded in here, once).
    gates_tm = _dense(x_tm, wih_t, b_all).reshape(T, B, 4 * H)

    # (2) Time-chunked recurrence, emitting lane-dense hidden states.
    kernel = functools.partial(_lstm_recurrent_kernel, hidden_size=H, chunk=chunk,
                               unroll=unroll)
    h_tm = pl.pallas_call(
        kernel,
        out_shape=jax.ShapeDtypeStruct((T, B, H), jnp.float32),
        grid_spec=pltpu.PrefetchScalarGridSpec(
            num_scalar_prefetch=0,
            grid=(T // chunk,),
            in_specs=[
                pl.BlockSpec((chunk, B, 4 * H), lambda t: (t, 0, 0)),   # gates_x chunk
                pl.BlockSpec((H, 4 * H), lambda t: (0, 0)),             # W_hh^T (resident)
            ],
            out_specs=pl.BlockSpec((chunk, B, H), lambda t: (t, 0, 0)),
            scratch_shapes=[
                pltpu.VMEM((B, H), jnp.float32),   # h carry
                pltpu.VMEM((B, H), jnp.float32),   # c carry
            ],
        ),
        compiler_params=pltpu.CompilerParams(
            # Time is a true recurrence -> sequential.  On v7x with large B, add a
            # leading "parallel" batch grid axis to engage the second TensorCore.
            dimension_semantics=("arbitrary",),
        ),
    )(gates_tm, whh_t)

    # Dropout is identity in eval mode.
    # TODO(synk): training-mode dropout (mask via pltpu.prng_random_bits) not implemented.

    # (3) Deferred output projection as one GEMM; only the tiny (T, B, L) result is
    #     transposed back to batch_first.
    out_tm = _dense(h_tm.reshape(T * B, H), wout_t, bout).reshape(T, B, L)
    return jnp.transpose(out_tm, (1, 0, 2))                # (B, T, L)


# --------------------------------------------------------------------------------------
# Pure-JAX reference and parameter init.
# --------------------------------------------------------------------------------------
def lstm_class_reference(x, params):
    """Pure-JAX reference of LSTMClass.forward (eval mode)."""
    w_ih, w_hh, b_ih, b_hh, w3, b3 = (
        params["w_ih"], params["w_hh"], params["b_ih"], params["b_hh"],
        params["w3"], params["b3"])
    B, T, D = x.shape
    H = w_hh.shape[1]

    def step(carry, x_t):
        h, c = carry
        gates = x_t @ w_ih.T + h @ w_hh.T + b_ih + b_hh
        i = jax.nn.sigmoid(gates[:, 0 * H:1 * H])
        f = jax.nn.sigmoid(gates[:, 1 * H:2 * H])
        g = jnp.tanh(gates[:, 2 * H:3 * H])
        o = jax.nn.sigmoid(gates[:, 3 * H:4 * H])
        c_new = f * c + i * g
        h_new = o * jnp.tanh(c_new)
        return (h_new, c_new), h_new

    h0 = jnp.zeros((B, H), jnp.float32)
    c0 = jnp.zeros((B, H), jnp.float32)
    _, hs = jax.lax.scan(step, (h0, c0), jnp.transpose(x, (1, 0, 2)))
    hs = jnp.transpose(hs, (1, 0, 2))                      # (B, T, H)
    return hs @ w3.T + b3


def init_params(key, input_dim, hidden_size, list_num):
    """Deterministic parameter init (PyTorch-style uniform(-1/sqrt(H), 1/sqrt(H)))."""
    ks = jax.random.split(key, 6)
    bound = 1.0 / jnp.sqrt(jnp.float32(hidden_size))
    u = lambda k, shape: jax.random.uniform(k, shape, jnp.float32, -bound, bound)
    return {
        "w_ih": u(ks[0], (4 * hidden_size, input_dim)),
        "w_hh": u(ks[1], (4 * hidden_size, hidden_size)),
        "b_ih": u(ks[2], (4 * hidden_size,)),
        "b_hh": u(ks[3], (4 * hidden_size,)),
        "w3":   u(ks[4], (list_num, hidden_size)),
        "b3":   u(ks[5], (list_num,)),
    }


if __name__ == "__main__":
    B, T, D, H, L = 2, 16, 4, 32, 3   # T=16 with chunk=8 exercises the cross-chunk carry

    key = jax.random.PRNGKey(0)
    k_x, k_p = jax.random.split(key)
    x = jax.random.normal(k_x, (B, T, D), jnp.float32)
    params = init_params(k_p, D, H, L)

    fwd = jax.jit(functools.partial(lstm_class_forward, time_chunk=8))
    out = jax.block_until_ready(fwd(x, params))
    ref = jax.block_until_ready(lstm_class_reference(x, params))

    assert out.shape == (B, T, L), out.shape
    assert jnp.allclose(out, ref, rtol=1e-4, atol=1e-4), float(jnp.max(jnp.abs(out - ref)))
    print("KERNEL_OK")
</pallas_src>

<mosaic_0001>
module attributes {stable_mosaic.version = 11 : i64} {
  func.func @_dense_kernel(%arg0: i32, %arg1: memref<32x4xf32, #tpu.memory_space<vmem>>, %arg2: memref<4x128xf32, #tpu.memory_space<vmem>>, %arg3: memref<1x128xf32, #tpu.memory_space<vmem>>, %arg4: memref<32x128xf32, #tpu.memory_space<vmem>>) attributes {dimension_semantics = [#tpu.dimension_semantics<parallel>], iteration_bounds = array<i64: 1>, scalar_prefetch = 0 : i64, scratch_operands = 0 : i64, tpu.core_type = #tpu.core_type<tc>, window_params = [{transform_indices = @transform_0, window_bounds = array<i64: 32, 4>}, {pipeline_mode = #tpu.pipeline_mode<synchronous>, transform_indices = @transform_1, window_bounds = array<i64: 4, 128>}, {pipeline_mode = #tpu.pipeline_mode<synchronous>, transform_indices = @transform_2, window_bounds = array<i64: 1, 128>}, {transform_indices = @transform_3, window_bounds = array<i64: 32, 128>}]} {
    %c0 = arith.constant 0 : index
    %c0_0 = arith.constant 0 : index
    %0 = vector.load %arg1[%c0, %c0_0] : memref<32x4xf32, #tpu.memory_space<vmem>>, vector<32x4xf32>
    %c0_1 = arith.constant 0 : index
    %c0_2 = arith.constant 0 : index
    %1 = vector.load %arg2[%c0_1, %c0_2] : memref<4x128xf32, #tpu.memory_space<vmem>>, vector<4x128xf32>
    %cst = arith.constant dense<0.000000e+00> : vector<32x128xf32>
    %2 = tpu.matmul %0, %1, %cst {dimension_numbers = #tpu.dot_dimension_numbers<[1], [0], [0], [1], [0, 0, 1, 1], [], []>} : vector<32x4xf32>, vector<4x128xf32>, vector<32x128xf32> -> vector<32x128xf32>
    %c0_3 = arith.constant 0 : index
    %c0_4 = arith.constant 0 : index
    %3 = vector.load %arg3[%c0_3, %c0_4] : memref<1x128xf32, #tpu.memory_space<vmem>>, vector<1x128xf32>
    %4 = vector.broadcast %3 : vector<1x128xf32> to vector<32x128xf32>
    %5 = arith.addf %2, %4 : vector<32x128xf32>
    %c0_5 = arith.constant 0 : index
    %c0_6 = arith.constant 0 : index
    %6 = vector.load %arg4[%c0_5, %c0_6] : memref<32x128xf32, #tpu.memory_space<vmem>>, vector<32x128xf32>
    tpu.vector_store %arg4[%c0_5, %c0_6], %5 {strides = array<i32>} : memref<32x128xf32, #tpu.memory_space<vmem>>, vector<32x128xf32>,
    return
  }
  func.func @transform_0(%arg0: i32) -> (i32, i32) {
    %c0_i32 = arith.constant 0 : i32
    %c0_i32_0 = arith.constant 0 : i32
    return %arg0, %c0_i32 : i32, i32
  }
  func.func @transform_1(%arg0: i32) -> (i32, i32) {
    %c0_i32 = arith.constant 0 : i32
    %c0_i32_0 = arith.constant 0 : i32
    %c0_i32_1 = arith.constant 0 : i32
    return %c0_i32, %c0_i32_0 : i32, i32
  }
  func.func @transform_2(%arg0: i32) -> (i32, i32) {
    %c0_i32 = arith.constant 0 : i32
    %c0_i32_0 = arith.constant 0 : i32
    %c0_i32_1 = arith.constant 0 : i32
    return %c0_i32, %c0_i32_0 : i32, i32
  }
  func.func @transform_3(%arg0: i32) -> (i32, i32) {
    %c0_i32 = arith.constant 0 : i32
    %c0_i32_0 = arith.constant 0 : i32
    return %arg0, %c0_i32 : i32, i32
  }
}

module attributes {stable_mosaic.version = 11 : i64} {
  func.func @_lstm_recurrent_kernel(%arg0: i32, %arg1: memref<8x2x128xf32, #tpu.memory_space<vmem>>, %arg2: memref<32x128xf32, #tpu.memory_space<vmem>>, %arg3: memref<8x2x32xf32, #tpu.memory_space<vmem>>, %arg4: memref<2x32xf32, #tpu.memory_space<vmem>>, %arg5: memref<2x32xf32, #tpu.memory_space<vmem>>) attributes {dimension_semantics = [#tpu.dimension_semantics<arbitrary>], iteration_bounds = array<i64: 2>, scalar_prefetch = 0 : i64, scratch_operands = 2 : i64, tpu.core_type = #tpu.core_type<tc>, window_params = [{transform_indices = @transform_0, window_bounds = array<i64: 8, 2, 128>}, {pipeline_mode = #tpu.pipeline_mode<synchronous>, transform_indices = @transform_1, window_bounds = array<i64: 32, 128>}, {transform_indices = @transform_2, window_bounds = array<i64: 8, 2, 32>}]} {
    %c0_i32 = arith.constant 0 : i32
    %0 = arith.cmpi eq, %arg0, %c0_i32 : i32
    %1 = arith.extui %0 : i1 to i32
    %c0_i32_0 = arith.constant 0 : i32
    %2 = arith.cmpi ne, %1, %c0_i32_0 : i32
    scf.if %2 {
      %cst_74 = arith.constant 0.000000e+00 : f32
      %280 = vector.broadcast %cst_74 : f32 to vector<2x32xf32>
      %c0_75 = arith.constant 0 : index
      %c0_76 = arith.constant 0 : index
      %281 = vector.load %arg4[%c0_75, %c0_76] : memref<2x32xf32, #tpu.memory_space<vmem>>, vector<2x32xf32>
      tpu.vector_store %arg4[%c0_75, %c0_76], %280 {strides = array<i32>} : memref<2x32xf32, #tpu.memory_space<vmem>>, vector<2x32xf32>,
      %cst_77 = arith.constant 0.000000e+00 : f32
      %282 = vector.broadcast %cst_77 : f32 to vector<2x32xf32>
      %c0_78 = arith.constant 0 : index
      %c0_79 = arith.constant 0 : index
      %283 = vector.load %arg5[%c0_78, %c0_79] : memref<2x32xf32, #tpu.memory_space<vmem>>, vector<2x32xf32>
      tpu.vector_store %arg5[%c0_78, %c0_79], %282 {strides = array<i32>} : memref<2x32xf32, #tpu.memory_space<vmem>>, vector<2x32xf32>,
    } else {
    }
    %c0 = arith.constant 0 : index
    %c0_1 = arith.constant 0 : index
    %3 = vector.load %arg2[%c0, %c0_1] : memref<32x128xf32, #tpu.memory_space<vmem>>, vector<32x128xf32>
    %c0_2 = arith.constant 0 : index
    %c0_3 = arith.constant 0 : index
    %4 = vector.load %arg4[%c0_2, %c0_3] : memref<2x32xf32, #tpu.memory_space<vmem>>, vector<2x32xf32>
    %c0_4 = arith.constant 0 : index
    %c0_5 = arith.constant 0 : index
    %5 = vector.load %arg5[%c0_4, %c0_5] : memref<2x32xf32, #tpu.memory_space<vmem>>, vector<2x32xf32>
    %c0_i32_6 = arith.constant 0 : i32
    %6 = arith.index_cast %c0_i32_6 : i32 to index
    %c0_7 = arith.constant 0 : index
    %c0_8 = arith.constant 0 : index
    %7 = vector.load %arg1[%6, %c0_7, %c0_8] : memref<8x2x128xf32, #tpu.memory_space<vmem>>, vector<1x2x128xf32>
    %8 = vector.shape_cast %7 : vector<1x2x128xf32> to vector<2x128xf32>
    %cst = arith.constant dense<0.000000e+00> : vector<2x128xf32>
    %9 = tpu.matmul %4, %3, %cst {dimension_numbers = #tpu.dot_dimension_numbers<[1], [0], [0], [1], [0, 0, 1, 1], [], []>} : vector<2x32xf32>, vector<32x128xf32>, vector<2x128xf32> -> vector<2x128xf32>
    %10 = arith.addf %8, %9 : vector<2x128xf32>
    %11 = vector.extract_strided_slice %10 {offsets = [0, 0], sizes = [2, 32], strides = [1, 1]} : vector<2x128xf32> to vector<2x32xf32>
    %12 = arith.negf %11 : vector<2x32xf32>
    %13 = math.exp %12 : vector<2x32xf32>
    %cst_9 = arith.constant 1.000000e+00 : f32
    %14 = vector.broadcast %cst_9 : f32 to vector<2x32xf32>
    %15 = arith.addf %14, %13 : vector<2x32xf32>
    %16 = arith.divf %14, %15 : vector<2x32xf32>
    %17 = vector.extract_strided_slice %10 {offsets = [0, 32], sizes = [2, 32], strides = [1, 1]} : vector<2x128xf32> to vector<2x32xf32>
    %18 = arith.negf %17 : vector<2x32xf32>
    %19 = math.exp %18 : vector<2x32xf32>
    %cst_10 = arith.constant 1.000000e+00 : f32
    %20 = vector.broadcast %cst_10 : f32 to vector<2x32xf32>
    %21 = arith.addf %20, %19 : vector<2x32xf32>
    %22 = arith.divf %20, %21 : vector<2x32xf32>
    %23 = vector.extract_strided_slice %10 {offsets = [0, 64], sizes = [2, 32], strides = [1, 1]} : vector<2x128xf32> to vector<2x32xf32>
    %24 = math.tanh %23 : vector<2x32xf32>
    %25 = vector.extract_strided_slice %10 {offsets = [0, 96], sizes = [2, 32], strides = [1, 1]} : vector<2x128xf32> to vector<2x32xf32>
    %26 = arith.negf %25 : vector<2x32xf32>
    %27 = math.exp %26 : vector<2x32xf32>
    %cst_11 = arith.constant 1.000000e+00 : f32
    %28 = vector.broadcast %cst_11 : f32 to vector<2x32xf32>
    %29 = arith.addf %28, %27 : vector<2x32xf32>
    %30 = arith.divf %28, %29 : vector<2x32xf32>
    %31 = arith.mulf %22, %5 : vector<2x32xf32>
    %32 = arith.mulf %16, %24 : vector<2x32xf32>
    %33 = arith.addf %31, %32 : vector<2x32xf32>
    %34 = math.tanh %33 : vector<2x32xf32>
    %35 = arith.mulf %30, %34 : vector<2x32xf32>
    %36 = arith.index_cast %c0_i32_6 : i32 to index
    %c0_12 = arith.constant 0 : index
    %c0_13 = arith.constant 0 : index
    %37 = vector.load %arg3[%36, %c0_12, %c0_13] : memref<8x2x32xf32, #tpu.memory_space<vmem>>, vector<1x2x32xf32>
    %38 = vector.shape_cast %37 : vector<1x2x32xf32> to vector<2x32xf32>
    %39 = vector.shape_cast %35 : vector<2x32xf32> to vector<1x2x32xf32>
    tpu.vector_store %arg3[%36, %c0_12, %c0_13], %39 {strides = array<i32>} : memref<8x2x32xf32, #tpu.memory_space<vmem>>, vector<1x2x32xf32>,
    %c1_i32 = arith.constant 1 : i32
    %40 = arith.index_cast %c1_i32 : i32 to index
    %c0_14 = arith.constant 0 : index
    %c0_15 = arith.constant 0 : index
    %41 = vector.load %arg1[%40, %c0_14, %c0_15] : memref<8x2x128xf32, #tpu.memory_space<vmem>>, vector<1x2x128xf32>
    %42 = vector.shape_cast %41 : vector<1x2x128xf32> to vector<2x128xf32>
    %cst_16 = arith.constant dense<0.000000e+00> : vector<2x128xf32>
    %43 = tpu.matmul %35, %3, %cst_16 {dimension_numbers = #tpu.dot_dimension_numbers<[1], [0], [0], [1], [0, 0, 1, 1], [], []>} : vector<2x32xf32>, vector<32x128xf32>, vector<2x128xf32> -> vector<2x128xf32>
    %44 = arith.addf %42, %43 : vector<2x128xf32>
    %45 = vector.extract_strided_slice %44 {offsets = [0, 0], sizes = [2, 32], strides = [1, 1]} : vector<2x128xf32> to vector<2x32xf32>
    %46 = arith.negf %45 : vector<2x32xf32>
    %47 = math.exp %46 : vector<2x32xf32>
    %cst_17 = arith.constant 1.000000e+00 : f32
    %48 = vector.broadcast %cst_17 : f32 to vector<2x32xf32>
    %49 = arith.addf %48, %47 : vector<2x32xf32>
    %50 = arith.divf %48, %49 : vector<2x32xf32>
    %51 = vector.extract_strided_slice %44 {offsets = [0, 32], sizes = [2, 32], strides = [1, 1]} : vector<2x128xf32> to vector<2x32xf32>
    %52 = arith.negf %51 : vector<2x32xf32>
    %53 = math.exp %52 : vector<2x32xf32>
    %cst_18 = arith.constant 1.000000e+00 : f32
    %54 = vector.broadcast %cst_18 : f32 to vector<2x32xf32>
    %55 = arith.addf %54, %53 : vector<2x32xf32>
    %56 = arith.divf %54, %55 : vector<2x32xf32>
    %57 = vector.extract_strided_slice %44 {offsets = [0, 64], sizes = [2, 32], strides = [1, 1]} : vector<2x128xf32> to vector<2x32xf32>
    %58 = math.tanh %57 : vector<2x32xf32>
    %59 = vector.extract_strided_slice %44 {offsets = [0, 96], sizes = [2, 32], strides = [1, 1]} : vector<2x128xf32> to vector<2x32xf32>
    %60 = arith.negf %59 : vector<2x32xf32>
    %61 = math.exp %60 : vector<2x32xf32>
    %cst_19 = arith.constant 1.000000e+00 : f32
    %62 = vector.broadcast %cst_19 : f32 to vector<2x32xf32>
    %63 = arith.addf %62, %61 : vector<2x32xf32>
    %64 = arith.divf %62, %63 : vector<2x32xf32>
    %65 = arith.mulf %56, %33 : vector<2x32xf32>
    %66 = arith.mulf %50, %58 : vector<2x32xf32>
    %67 = arith.addf %65, %66 : vector<2x32xf32>
    %68 = math.tanh %67 : vector<2x32xf32>
    %69 = arith.mulf %64, %68 : vector<2x32xf32>
    %70 = arith.index_cast %c1_i32 : i32 to index
    %c0_20 = arith.constant 0 : index
    %c0_21 = arith.constant 0 : index
    %71 = vector.load %arg3[%70, %c0_20, %c0_21] : memref<8x2x32xf32, #tpu.memory_space<vmem>>, vector<1x2x32xf32>
    %72 = vector.shape_cast %71 : vector<1x2x32xf32> to vector<2x32xf32>
    %73 = vector.shape_cast %69 : vector<2x32xf32> to vector<1x2x32xf32>
    tpu.vector_store %arg3[%70, %c0_20, %c0_21], %73 {strides = array<i32>} : memref<8x2x32xf32, #tpu.memory_space<vmem>>, vector<1x2x32xf32>,
    %c2_i32 = arith.constant 2 : i32
    %74 = arith.index_cast %c2_i32 : i32 to index
    %c0_22 = arith.constant 0 : index
    %c0_23 = arith.constant 0 : index
    %75 = vector.load %arg1[%74, %c0_22, %c0_23] : memref<8x2x128xf32, #tpu.memory_space<vmem>>, vector<1x2x128xf32>
    %76 = vector.shape_cast %75 : vector<1x2x128xf32> to vector<2x128xf32>
    %cst_24 = arith.constant dense<0.000000e+00> : vector<2x128xf32>
    %77 = tpu.matmul %69, %3, %cst_24 {dimension_numbers = #tpu.dot_dimension_numbers<[1], [0], [0], [1], [0, 0, 1, 1], [], []>} : vector<2x32xf32>, vector<32x128xf32>, vector<2x128xf32> -> vector<2x128xf32>
    %78 = arith.addf %76, %77 : vector<2x128xf32>
    %79 = vector.extract_strided_slice %78 {offsets = [0, 0], sizes = [2, 32], strides = [1, 1]} : vector<2x128xf32> to vector<2x32xf32>
    %80 = arith.negf %79 : vector<2x32xf32>
    %81 = math.exp %80 : vector<2x32xf32>
    %cst_25 = arith.constant 1.000000e+00 : f32
    %82 = vector.broadcast %cst_25 : f32 to vector<2x32xf32>
    %83 = arith.addf %82, %81 : vector<2x32xf32>
    %84 = arith.divf %82, %83 : vector<2x32xf32>
    %85 = vector.extract_strided_slice %78 {offsets = [0, 32], sizes = [2, 32], strides = [1, 1]} : vector<2x128xf32> to vector<2x32xf32>
    %86 = arith.negf %85 : vector<2x32xf32>
    %87 = math.exp %86 : vector<2x32xf32>
    %cst_26 = arith.constant 1.000000e+00 : f32
    %88 = vector.broadcast %cst_26 : f32 to vector<2x32xf32>
    %89 = arith.addf %88, %87 : vector<2x32xf32>
    %90 = arith.divf %88, %89 : vector<2x32xf32>
    %91 = vector.extract_strided_slice %78 {offsets = [0, 64], sizes = [2, 32], strides = [1, 1]} : vector<2x128xf32> to vector<2x32xf32>
    %92 = math.tanh %91 : vector<2x32xf32>
    %93 = vector.extract_strided_slice %78 {offsets = [0, 96], sizes = [2, 32], strides = [1, 1]} : vector<2x128xf32> to vector<2x32xf32>
    %94 = arith.negf %93 : vector<2x32xf32>
    %95 = math.exp %94 : vector<2x32xf32>
    %cst_27 = arith.constant 1.000000e+00 : f32
    %96 = vector.broadcast %cst_27 : f32 to vector<2x32xf32>
    %97 = arith.addf %96, %95 : vector<2x32xf32>
    %98 = arith.divf %96, %97 : vector<2x32xf32>
    %99 = arith.mulf %90, %67 : vector<2x32xf32>
    %100 = arith.mulf %84, %92 : vector<2x32xf32>
    %101 = arith.addf %99, %100 : vector<2x32xf32>
    %102 = math.tanh %101 : vector<2x32xf32>
    %103 = arith.mulf %98, %102 : vector<2x32xf32>
    %104 = arith.index_cast %c2_i32 : i32 to index
    %c0_28 = arith.constant 0 : index
    %c0_29 = arith.constant 0 : index
    %105 = vector.load %arg3[%104, %c0_28, %c0_29] : memref<8x2x32xf32, #tpu.memory_space<vmem>>, vector<1x2x32xf32>
    %106 = vector.shape_cast %105 : vector<1x2x32xf32> to vector<2x32xf32>
    %107 = vector.shape_cast %103 : vector<2x32xf32> to vector<1x2x32xf32>
    tpu.vector_store %arg3[%104, %c0_28, %c0_29], %107 {strides = array<i32>} : memref<8x2x32xf32, #tpu.memory_space<vmem>>, vector<1x2x32xf32>,
    %c3_i32 = arith.constant 3 : i32
    %108 = arith.index_cast %c3_i32 : i32 to index
    %c0_30 = arith.constant 0 : index
    %c0_31 = arith.constant 0 : index
    %109 = vector.load %arg1[%108, %c0_30, %c0_31] : memref<8x2x128xf32, #tpu.memory_space<vmem>>, vector<1x2x128xf32>
    %110 = vector.shape_cast %109 : vector<1x2x128xf32> to vector<2x128xf32>
    %cst_32 = arith.constant dense<0.000000e+00> : vector<2x128xf32>
    %111 = tpu.matmul %103, %3, %cst_32 {dimension_numbers = #tpu.dot_dimension_numbers<[1], [0], [0], [1], [0, 0, 1, 1], [], []>} : vector<2x32xf32>, vector<32x128xf32>, vector<2x128xf32> -> vector<2x128xf32>
    %112 = arith.addf %110, %111 : vector<2x128xf32>
    %113 = vector.extract_strided_slice %112 {offsets = [0, 0], sizes = [2, 32], strides = [1, 1]} : vector<2x128xf32> to vector<2x32xf32>
    %114 = arith.negf %113 : vector<2x32xf32>
    %115 = math.exp %114 : vector<2x32xf32>
    %cst_33 = arith.constant 1.000000e+00 : f32
    %116 = vector.broadcast %cst_33 : f32 to vector<2x32xf32>
    %117 = arith.addf %116, %115 : vector<2x32xf32>
    %118 = arith.divf %116, %117 : vector<2x32xf32>
    %119 = vector.extract_strided_slice %112 {offsets = [0, 32], sizes = [2, 32], strides = [1, 1]} : vector<2x128xf32> to vector<2x32xf32>
    %120 = arith.negf %119 : vector<2x32xf32>
    %121 = math.exp %120 : vector<2x32xf32>
    %cst_34 = arith.constant 1.000000e+00 : f32
    %122 = vector.broadcast %cst_34 : f32 to vector<2x32xf32>
    %123 = arith.addf %122, %121 : vector<2x32xf32>
    %124 = arith.divf %122, %123 : vector<2x32xf32>
    %125 = vector.extract_strided_slice %112 {offsets = [0, 64], sizes = [2, 32], strides = [1, 1]} : vector<2x128xf32> to vector<2x32xf32>
    %126 = math.tanh %125 : vector<2x32xf32>
    %127 = vector.extract_strided_slice %112 {offsets = [0, 96], sizes = [2, 32], strides = [1, 1]} : vector<2x128xf32> to vector<2x32xf32>
    %128 = arith.negf %127 : vector<2x32xf32>
    %129 = math.exp %128 : vector<2x32xf32>
    %cst_35 = arith.constant 1.000000e+00 : f32
    %130 = vector.broadcast %cst_35 : f32 to vector<2x32xf32>
    %131 = arith.addf %130, %129 : vector<2x32xf32>
    %132 = arith.divf %130, %131 : vector<2x32xf32>
    %133 = arith.mulf %124, %101 : vector<2x32xf32>
    %134 = arith.mulf %118, %126 : vector<2x32xf32>
    %135 = arith.addf %133, %134 : vector<2x32xf32>
    %136 = math.tanh %135 : vector<2x32xf32>
    %137 = arith.mulf %132, %136 : vector<2x32xf32>
    %138 = arith.index_cast %c3_i32 : i32 to index
    %c0_36 = arith.constant 0 : index
    %c0_37 = arith.constant 0 : index
    %139 = vector.load %arg3[%138, %c0_36, %c0_37] : memref<8x2x32xf32, #tpu.memory_space<vmem>>, vector<1x2x32xf32>
    %140 = vector.shape_cast %139 : vector<1x2x32xf32> to vector<2x32xf32>
    %141 = vector.shape_cast %137 : vector<2x32xf32> to vector<1x2x32xf32>
    tpu.vector_store %arg3[%138, %c0_36, %c0_37], %141 {strides = array<i32>} : memref<8x2x32xf32, #tpu.memory_space<vmem>>, vector<1x2x32xf32>,
    %c4_i32 = arith.constant 4 : i32
    %142 = arith.index_cast %c4_i32 : i32 to index
    %c0_38 = arith.constant 0 : index
    %c0_39 = arith.constant 0 : index
    %143 = vector.load %arg1[%142, %c0_38, %c0_39] : memref<8x2x128xf32, #tpu.memory_space<vmem>>, vector<1x2x128xf32>
    %144 = vector.shape_cast %143 : vector<1x2x128xf32> to vector<2x128xf32>
    %cst_40 = arith.constant dense<0.000000e+00> : vector<2x128xf32>
    %145 = tpu.matmul %137, %3, %cst_40 {dimension_numbers = #tpu.dot_dimension_numbers<[1], [0], [0], [1], [0, 0, 1, 1], [], []>} : vector<2x32xf32>, vector<32x128xf32>, vector<2x128xf32> -> vector<2x128xf32>
    %146 = arith.addf %144, %145 : vector<2x128xf32>
    %147 = vector.extract_strided_slice %146 {offsets = [0, 0], sizes = [2, 32], strides = [1, 1]} : vector<2x128xf32> to vector<2x32xf32>
    %148 = arith.negf %147 : vector<2x32xf32>
    %149 = math.exp %148 : vector<2x32xf32>
    %cst_41 = arith.constant 1.000000e+00 : f32
    %150 = vector.broadcast %cst_41 : f32 to vector<2x32xf32>
    %151 = arith.addf %150, %149 : vector<2x32xf32>
    %152 = arith.divf %150, %151 : vector<2x32xf32>
    %153 = vector.extract_strided_slice %146 {offsets = [0, 32], sizes = [2, 32], strides = [1, 1]} : vector<2x128xf32> to vector<2x32xf32>
    %154 = arith.negf %153 : vector<2x32xf32>
    %155 = math.exp %154 : vector<2x32xf32>
    %cst_42 = arith.constant 1.000000e+00 : f32
    %156 = vector.broadcast %cst_42 : f32 to vector<2x32xf32>
    %157 = arith.addf %156, %155 : vector<2x32xf32>
    %158 = arith.divf %156, %157 : vector<2x32xf32>
    %159 = vector.extract_strided_slice %146 {offsets = [0, 64], sizes = [2, 32], strides = [1, 1]} : vector<2x128xf32> to vector<2x32xf32>
    %160 = math.tanh %159 : vector<2x32xf32>
    %161 = vector.extract_strided_slice %146 {offsets = [0, 96], sizes = [2, 32], strides = [1, 1]} : vector<2x128xf32> to vector<2x32xf32>
    %162 = arith.negf %161 : vector<2x32xf32>
    %163 = math.exp %162 : vector<2x32xf32>
    %cst_43 = arith.constant 1.000000e+00 : f32
    %164 = vector.broadcast %cst_43 : f32 to vector<2x32xf32>
    %165 = arith.addf %164, %163 : vector<2x32xf32>
    %166 = arith.divf %164, %165 : vector<2x32xf32>
    %167 = arith.mulf %158, %135 : vector<2x32xf32>
    %168 = arith.mulf %152, %160 : vector<2x32xf32>
    %169 = arith.addf %167, %168 : vector<2x32xf32>
    %170 = math.tanh %169 : vector<2x32xf32>
    %171 = arith.mulf %166, %170 : vector<2x32xf32>
    %172 = arith.index_cast %c4_i32 : i32 to index
    %c0_44 = arith.constant 0 : index
    %c0_45 = arith.constant 0 : index
    %173 = vector.load %arg3[%172, %c0_44, %c0_45] : memref<8x2x32xf32, #tpu.memory_space<vmem>>, vector<1x2x32xf32>
    %174 = vector.shape_cast %173 : vector<1x2x32xf32> to vector<2x32xf32>
    %175 = vector.shape_cast %171 : vector<2x32xf32> to vector<1x2x32xf32>
    tpu.vector_store %arg3[%172, %c0_44, %c0_45], %175 {strides = array<i32>} : memref<8x2x32xf32, #tpu.memory_space<vmem>>, vector<1x2x32xf32>,
    %c5_i32 = arith.constant 5 : i32
    %176 = arith.index_cast %c5_i32 : i32 to index
    %c0_46 = arith.constant 0 : index
    %c0_47 = arith.constant 0 : index
    %177 = vector.load %arg1[%176, %c0_46, %c0_47] : memref<8x2x128xf32, #tpu.memory_space<vmem>>, vector<1x2x128xf32>
    %178 = vector.shape_cast %177 : vector<1x2x128xf32> to vector<2x128xf32>
    %cst_48 = arith.constant dense<0.000000e+00> : vector<2x128xf32>
    %179 = tpu.matmul %171, %3, %cst_48 {dimension_numbers = #tpu.dot_dimension_numbers<[1], [0], [0], [1], [0, 0, 1, 1], [], []>} : vector<2x32xf32>, vector<32x128xf32>, vector<2x128xf32> -> vector<2x128xf32>
    %180 = arith.addf %178, %179 : vector<2x128xf32>
    %181 = vector.extract_strided_slice %180 {offsets = [0, 0], sizes = [2, 32], strides = [1, 1]} : vector<2x128xf32> to vector<2x32xf32>
    %182 = arith.negf %181 : vector<2x32xf32>
    %183 = math.exp %182 : vector<2x32xf32>
    %cst_49 = arith.constant 1.000000e+00 : f32
    %184 = vector.broadcast %cst_49 : f32 to vector<2x32xf32>
    %185 = arith.addf %184, %183 : vector<2x32xf32>
    %186 = arith.divf %184, %185 : vector<2x32xf32>
    %187 = vector.extract_strided_slice %180 {offsets = [0, 32], sizes = [2, 32], strides = [1, 1]} : vector<2x128xf32> to vector<2x32xf32>
    %188 = arith.negf %187 : vector<2x32xf32>
    %189 = math.exp %188 : vector<2x32xf32>
    %cst_50 = arith.constant 1.000000e+00 : f32
    %190 = vector.broadcast %cst_50 : f32 to vector<2x32xf32>
    %191 = arith.addf %190, %189 : vector<2x32xf32>
    %192 = arith.divf %190, %191 : vector<2x32xf32>
    %193 = vector.extract_strided_slice %180 {offsets = [0, 64], sizes = [2, 32], strides = [1, 1]} : vector<2x128xf32> to vector<2x32xf32>
    %194 = math.tanh %193 : vector<2x32xf32>
    %195 = vector.extract_strided_slice %180 {offsets = [0, 96], sizes = [2, 32], strides = [1, 1]} : vector<2x128xf32> to vector<2x32xf32>
    %196 = arith.negf %195 : vector<2x32xf32>
    %197 = math.exp %196 : vector<2x32xf32>
    %cst_51 = arith.constant 1.000000e+00 : f32
    %198 = vector.broadcast %cst_51 : f32 to vector<2x32xf32>
    %199 = arith.addf %198, %197 : vector<2x32xf32>
    %200 = arith.divf %198, %199 : vector<2x32xf32>
    %201 = arith.mulf %192, %169 : vector<2x32xf32>
    %202 = arith.mulf %186, %194 : vector<2x32xf32>
    %203 = arith.addf %201, %202 : vector<2x32xf32>
    %204 = math.tanh %203 : vector<2x32xf32>
    %205 = arith.mulf %200, %204 : vector<2x32xf32>
    %206 = arith.index_cast %c5_i32 : i32 to index
    %c0_52 = arith.constant 0 : index
    %c0_53 = arith.constant 0 : index
    %207 = vector.load %arg3[%206, %c0_52, %c0_53] : memref<8x2x32xf32, #tpu.memory_space<vmem>>, vector<1x2x32xf32>
    %208 = vector.shape_cast %207 : vector<1x2x32xf32> to vector<2x32xf32>
    %209 = vector.shape_cast %205 : vector<2x32xf32> to vector<1x2x32xf32>
    tpu.vector_store %arg3[%206, %c0_52, %c0_53], %209 {strides = array<i32>} : memref<8x2x32xf32, #tpu.memory_space<vmem>>, vector<1x2x32xf32>,
    %c6_i32 = arith.constant 6 : i32
    %210 = arith.index_cast %c6_i32 : i32 to index
    %c0_54 = arith.constant 0 : index
    %c0_55 = arith.constant 0 : index
    %211 = vector.load %arg1[%210, %c0_54, %c0_55] : memref<8x2x128xf32, #tpu.memory_space<vmem>>, vector<1x2x128xf32>
    %212 = vector.shape_cast %211 : vector<1x2x128xf32> to vector<2x128xf32>
    %cst_56 = arith.constant dense<0.000000e+00> : vector<2x128xf32>
    %213 = tpu.matmul %205, %3, %cst_56 {dimension_numbers = #tpu.dot_dimension_numbers<[1], [0], [0], [1], [0, 0, 1, 1], [], []>} : vector<2x32xf32>, vector<32x128xf32>, vector<2x128xf32> -> vector<2x128xf32>
    %214 = arith.addf %212, %213 : vector<2x128xf32>
    %215 = vector.extract_strided_slice %214 {offsets = [0, 0], sizes = [2, 32], strides = [1, 1]} : vector<2x128xf32> to vector<2x32xf32>
    %216 = arith.negf %215 : vector<2x32xf32>
    %217 = math.exp %216 : vector<2x32xf32>
    %cst_57 = arith.constant 1.000000e+00 : f32
    %218 = vector.broadcast %cst_57 : f32 to vector<2x32xf32>
    %219 = arith.addf %218, %217 : vector<2x32xf32>
    %220 = arith.divf %218, %219 : vector<2x32xf32>
    %221 = vector.extract_strided_slice %214 {offsets = [0, 32], sizes = [2, 32], strides = [1, 1]} : vector<2x128xf32> to vector<2x32xf32>
    %222 = arith.negf %221 : vector<2x32xf32>
    %223 = math.exp %222 : vector<2x32xf32>
    %cst_58 = arith.constant 1.000000e+00 : f32
    %224 = vector.broadcast %cst_58 : f32 to vector<2x32xf32>
    %225 = arith.addf %224, %223 : vector<2x32xf32>
    %226 = arith.divf %224, %225 : vector<2x32xf32>
    %227 = vector.extract_strided_slice %214 {offsets = [0, 64], sizes = [2, 32], strides = [1, 1]} : vector<2x128xf32> to vector<2x32xf32>
    %228 = math.tanh %227 : vector<2x32xf32>
    %229 = vector.extract_strided_slice %214 {offsets = [0, 96], sizes = [2, 32], strides = [1, 1]} : vector<2x128xf32> to vector<2x32xf32>
    %230 = arith.negf %229 : vector<2x32xf32>
    %231 = math.exp %230 : vector<2x32xf32>
    %cst_59 = arith.constant 1.000000e+00 : f32
    %232 = vector.broadcast %cst_59 : f32 to vector<2x32xf32>
    %233 = arith.addf %232, %231 : vector<2x32xf32>
    %234 = arith.divf %232, %233 : vector<2x32xf32>
    %235 = arith.mulf %226, %203 : vector<2x32xf32>
    %236 = arith.mulf %220, %228 : vector<2x32xf32>
    %237 = arith.addf %235, %236 : vector<2x32xf32>
    %238 = math.tanh %237 : vector<2x32xf32>
    %239 = arith.mulf %234, %238 : vector<2x32xf32>
    %240 = arith.index_cast %c6_i32 : i32 to index
    %c0_60 = arith.constant 0 : index
    %c0_61 = arith.constant 0 : index
    %241 = vector.load %arg3[%240, %c0_60, %c0_61] : memref<8x2x32xf32, #tpu.memory_space<vmem>>, vector<1x2x32xf32>
    %242 = vector.shape_cast %241 : vector<1x2x32xf32> to vector<2x32xf32>
    %243 = vector.shape_cast %239 : vector<2x32xf32> to vector<1x2x32xf32>
    tpu.vector_store %arg3[%240, %c0_60, %c0_61], %243 {strides = array<i32>} : memref<8x2x32xf32, #tpu.memory_space<vmem>>, vector<1x2x32xf32>,
    %c7_i32 = arith.constant 7 : i32
    %244 = arith.index_cast %c7_i32 : i32 to index
    %c0_62 = arith.constant 0 : index
    %c0_63 = arith.constant 0 : index
    %245 = vector.load %arg1[%244, %c0_62, %c0_63] : memref<8x2x128xf32, #tpu.memory_space<vmem>>, vector<1x2x128xf32>
    %246 = vector.shape_cast %245 : vector<1x2x128xf32> to vector<2x128xf32>
    %cst_64 = arith.constant dense<0.000000e+00> : vector<2x128xf32>
    %247 = tpu.matmul %239, %3, %cst_64 {dimension_numbers = #tpu.dot_dimension_numbers<[1], [0], [0], [1], [0, 0, 1, 1], [], []>} : vector<2x32xf32>, vector<32x128xf32>, vector<2x128xf32> -> vector<2x128xf32>
    %248 = arith.addf %246, %247 : vector<2x128xf32>
    %249 = vector.extract_strided_slice %248 {offsets = [0, 0], sizes = [2, 32], strides = [1, 1]} : vector<2x128xf32> to vector<2x32xf32>
    %250 = arith.negf %249 : vector<2x32xf32>
    %251 = math.exp %250 : vector<2x32xf32>
    %cst_65 = arith.constant 1.000000e+00 : f32
    %252 = vector.broadcast %cst_65 : f32 to vector<2x32xf32>
    %253 = arith.addf %252, %251 : vector<2x32xf32>
    %254 = arith.divf %252, %253 : vector<2x32xf32>
    %255 = vector.extract_strided_slice %248 {offsets = [0, 32], sizes = [2, 32], strides = [1, 1]} : vector<2x128xf32> to vector<2x32xf32>
    %256 = arith.negf %255 : vector<2x32xf32>
    %257 = math.exp %256 : vector<2x32xf32>
    %cst_66 = arith.constant 1.000000e+00 : f32
    %258 = vector.broadcast %cst_66 : f32 to vector<2x32xf32>
    %259 = arith.addf %258, %257 : vector<2x32xf32>
    %260 = arith.divf %258, %259 : vector<2x32xf32>
    %261 = vector.extract_strided_slice %248 {offsets = [0, 64], sizes = [2, 32], strides = [1, 1]} : vector<2x128xf32> to vector<2x32xf32>
    %262 = math.tanh %261 : vector<2x32xf32>
    %263 = vector.extract_strided_slice %248 {offsets = [0, 96], sizes = [2, 32], strides = [1, 1]} : vector<2x128xf32> to vector<2x32xf32>
    %264 = arith.negf %263 : vector<2x32xf32>
    %265 = math.exp %264 : vector<2x32xf32>
    %cst_67 = arith.constant 1.000000e+00 : f32
    %266 = vector.broadcast %cst_67 : f32 to vector<2x32xf32>
    %267 = arith.addf %266, %265 : vector<2x32xf32>
    %268 = arith.divf %266, %267 : vector<2x32xf32>
    %269 = arith.mulf %260, %237 : vector<2x32xf32>
    %270 = arith.mulf %254, %262 : vector<2x32xf32>
    %271 = arith.addf %269, %270 : vector<2x32xf32>
    %272 = math.tanh %271 : vector<2x32xf32>
    %273 = arith.mulf %268, %272 : vector<2x32xf32>
    %274 = arith.index_cast %c7_i32 : i32 to index
    %c0_68 = arith.constant 0 : index
    %c0_69 = arith.constant 0 : index
    %275 = vector.load %arg3[%274, %c0_68, %c0_69] : memref<8x2x32xf32, #tpu.memory_space<vmem>>, vector<1x2x32xf32>
    %276 = vector.shape_cast %275 : vector<1x2x32xf32> to vector<2x32xf32>
    %277 = vector.shape_cast %273 : vector<2x32xf32> to vector<1x2x32xf32>
    tpu.vector_store %arg3[%274, %c0_68, %c0_69], %277 {strides = array<i32>} : memref<8x2x32xf32, #tpu.memory_space<vmem>>, vector<1x2x32xf32>,
    %c8_i32 = arith.constant 8 : i32
    %c0_70 = arith.constant 0 : index
    %c0_71 = arith.constant 0 : index
    %278 = vector.load %arg4[%c0_70, %c0_71] : memref<2x32xf32, #tpu.memory_space<vmem>>, vector<2x32xf32>
    tpu.vector_store %arg4[%c0_70, %c0_71], %273 {strides = array<i32>} : memref<2x32xf32, #tpu.memory_space<vmem>>, vector<2x32xf32>,
    %c0_72 = arith.constant 0 : index
    %c0_73 = arith.constant 0 : index
    %279 = vector.load %arg5[%c0_72, %c0_73] : memref<2x32xf32, #tpu.memory_space<vmem>>, vector<2x32xf32>
    tpu.vector_store %arg5[%c0_72, %c0_73], %271 {strides = array<i32>} : memref<2x32xf32, #tpu.memory_space<vmem>>, vector<2x32xf32>,
    return
  }
  func.func @transform_0(%arg0: i32) -> (i32, i32, i32) {
    %c0_i32 = arith.constant 0 : i32
    %c0_i32_0 = arith.constant 0 : i32
    %c0_i32_1 = arith.constant 0 : i32
    return %arg0, %c0_i32, %c0_i32_0 : i32, i32, i32
  }
  func.func @transform_1(%arg0: i32) -> (i32, i32) {
    %c0_i32 = arith.constant 0 : i32
    %c0_i32_0 = arith.constant 0 : i32
    %c0_i32_1 = arith.constant 0 : i32
    return %c0_i32, %c0_i32_0 : i32, i32
  }
  func.func @transform_2(%arg0: i32) -> (i32, i32, i32) {
    %c0_i32 = arith.constant 0 : i32
    %c0_i32_0 = arith.constant 0 : i32
    %c0_i32_1 = arith.constant 0 : i32
    return %arg0, %c0_i32, %c0_i32_0 : i32, i32, i32
  }
}

module attributes {stable_mosaic.version = 11 : i64} {
  func.func @_dense_kernel(%arg0: i32, %arg1: memref<32x32xf32, #tpu.memory_space<vmem>>, %arg2: memref<32x3xf32, #tpu.memory_space<vmem>>, %arg3: memref<1x3xf32, #tpu.memory_space<vmem>>, %arg4: memref<32x3xf32, #tpu.memory_space<vmem>>) attributes {dimension_semantics = [#tpu.dimension_semantics<parallel>], iteration_bounds = array<i64: 1>, scalar_prefetch = 0 : i64, scratch_operands = 0 : i64, tpu.core_type = #tpu.core_type<tc>, window_params = [{transform_indices = @transform_0, window_bounds = array<i64: 32, 32>}, {pipeline_mode = #tpu.pipeline_mode<synchronous>, transform_indices = @transform_1, window_bounds = array<i64: 32, 3>}, {pipeline_mode = #tpu.pipeline_mode<synchronous>, transform_indices = @transform_2, window_bounds = array<i64: 1, 3>}, {transform_indices = @transform_3, window_bounds = array<i64: 32, 3>}]} {
    %c0 = arith.constant 0 : index
    %c0_0 = arith.constant 0 : index
    %0 = vector.load %arg1[%c0, %c0_0] : memref<32x32xf32, #tpu.memory_space<vmem>>, vector<32x32xf32>
    %c0_1 = arith.constant 0 : index
    %c0_2 = arith.constant 0 : index
    %1 = vector.load %arg2[%c0_1, %c0_2] : memref<32x3xf32, #tpu.memory_space<vmem>>, vector<32x3xf32>
    %cst = arith.constant dense<0.000000e+00> : vector<32x3xf32>
    %2 = tpu.matmul %0, %1, %cst {dimension_numbers = #tpu.dot_dimension_numbers<[1], [0], [0], [1], [0, 0, 1, 1], [], []>} : vector<32x32xf32>, vector<32x3xf32>, vector<32x3xf32> -> vector<32x3xf32>
    %c0_3 = arith.constant 0 : index
    %c0_4 = arith.constant 0 : index
    %3 = vector.load %arg3[%c0_3, %c0_4] : memref<1x3xf32, #tpu.memory_space<vmem>>, vector<1x3xf32>
    %4 = vector.broadcast %3 : vector<1x3xf32> to vector<32x3xf32>
    %5 = arith.addf %2, %4 : vector<32x3xf32>
    %c0_5 = arith.constant 0 : index
    %c0_6 = arith.constant 0 : index
    %6 = vector.load %arg4[%c0_5, %c0_6] : memref<32x3xf32, #tpu.memory_space<vmem>>, vector<32x3xf32>
    tpu.vector_store %arg4[%c0_5, %c0_6], %5 {strides = array<i32>} : memref<32x3xf32, #tpu.memory_space<vmem>>, vector<32x3xf32>,
    return
  }
  func.func @transform_0(%arg0: i32) -> (i32, i32) {
    %c0_i32 = arith.constant 0 : i32
    %c0_i32_0 = arith.constant 0 : i32
    return %arg0, %c0_i32 : i32, i32
  }
  func.func @transform_1(%arg0: i32) -> (i32, i32) {
    %c0_i32 = arith.constant 0 : i32
    %c0_i32_0 = arith.constant 0 : i32
    %c0_i32_1 = arith.constant 0 : i32
    return %c0_i32, %c0_i32_0 : i32, i32
  }
  func.func @transform_2(%arg0: i32) -> (i32, i32) {
    %c0_i32 = arith.constant 0 : i32
    %c0_i32_0 = arith.constant 0 : i32
    %c0_i32_1 = arith.constant 0 : i32
    return %c0_i32, %c0_i32_0 : i32, i32
  }
  func.func @transform_3(%arg0: i32) -> (i32, i32) {
    %c0_i32 = arith.constant 0 : i32
    %c0_i32_0 = arith.constant 0 : i32
    return %arg0, %c0_i32 : i32, i32
  }
}

</mosaic_0001>

<llo_original>
// kernel: lstm_class_forward.3
$region0: #{lstm_class_forward.3}
  #allocation0 [shape = 'u32[]', space=smem, size = 0x4, offset = 0x4, fixed_abs, tag = 'smem constant byte address 0x4 - core index']
  #allocation1 [shape = 'u32[72,128]{1,0:T(1,128)}', space=vmem, size = 0x9000, scoped, tag = 'internal scratch']
  %s0 = inlined_call_operand.vmem [shape: f32[32,4], index: 0, kind: input, shape index: {}]
  %s1 = inlined_call_operand.vmem [shape: f32[4,128], index: 1, kind: input, shape index: {}]
  %s2 = inlined_call_operand.vmem [shape: f32[1,128], index: 2, kind: input, shape index: {}]
  %s3 = inlined_call_operand.vmem [shape: f32[32,128], index: 3, kind: output, shape index: {}]
  %s4 = sld [smem:[#allocation0]]
  $region22: #{lstm_class_forward.3} parent=0
    _
  %s6 = ssub.s32 1, %s4
  %s7 = scalar_select 0, %s6, %s4
  // Predicated region
  $region2: #{lstm_class_forward.3} parent=0 // pred_check
    _
  $region3: #{lstm_class_forward.3} parent=0 // pred_check_branch
    %9 = sbr.rel (0) target = $region5
  $region4: #{lstm_class_forward.3} parent=0 // pred_region
    _
  $region5: #{lstm_class_forward.3} parent=0 // pred_fallthru
    _
  // Predicated region
  $region6: #{lstm_class_forward.3} parent=0 // pred_check
    _
  $region7: #{lstm_class_forward.3} parent=0 // pred_check_branch
    %11 = sbr.rel (0) target = $region9
  $region8: #{lstm_class_forward.3} parent=0 // pred_region
    _
  $region9: #{lstm_class_forward.3} parent=0 // pred_fallthru
    _
  // Predicated region
  $region10: #{lstm_class_forward.3} parent=0 // pred_check
    _
  $region11: #{lstm_class_forward.3} parent=0 // pred_check_branch
    %13 = sbr.rel (0) target = $region13
  $region12: #{lstm_class_forward.3} parent=0 // pred_region
    _
  $region13: #{lstm_class_forward.3} parent=0 // pred_fallthru
    _
  %v14 = vld [vmem:[%s0] sm:$0xff]
  %v15 = vld [vmem:[%s0 + $0x8] sm:$0xff]
  %v16 = vld [vmem:[%s0 + $0x10] sm:$0xff]
  %v17 = vld [vmem:[%s0 + $0x18] sm:$0xff]
  %v18 = vld [vmem:[%s1] sm:$0xf]
  %v19 = vld [vmem:[%s2] sm:$0x1]
  %v21 = vperm.slane %v19, 0
  %vm23 = vcmask 31744
  %v25 = vsel %vm23, %v14, 0
  %v28 = vsel %vm23, %v15, 0
  %v31 = vsel %vm23, %v16, 0
  %v34 = vsel %vm23, %v17, 0
  %vm36 = vcmask 1043456
  %v38 = vsel %vm36, %v18, 0
  %40 = vmatpush.msra.mxu0 0.0
  %41 = vmatpush.msra.mxu0 0.0
  %42 = vmatpush.msra.mxu0 0.0
  %43 = vmatpush.msra.mxu0 0.0
  %44 = vmatpush.msra.mxu0 0.0
  %45 = vmatpush.msra.mxu0 0.0
  %46 = vmatpush.msra.mxu0 0.0
  %47 = vmatpush.msra.mxu0 0.0
  %48 = vmatpush.msra.mxu0 0.0
  %49 = vmatpush.msra.mxu0 0.0
  %50 = vmatpush.msra.mxu0 0.0
  %51 = vmatpush.msra.mxu0 0.0
  %52 = vmatpush.msra.mxu0 0.0
  %53 = vmatpush.msra.mxu0 0.0
  %54 = vmatpush.msra.mxu0 0.0
  %55 = vmatpush.msra.mxu0 %v38
  %56 = vmatmul.f32.gmra.mxu0 %v25
  %v57 = vpop.f32.mrf.mxu0
  %v58 = vadd.f32 %v21, %v57
  %59 = vmatmul.f32.gmra.mxu0 %v28
  %v60 = vpop.f32.mrf.mxu0
  %v61 = vadd.f32 %v21, %v60
  %62 = vmatmul.f32.gmra.mxu0 %v31
  %v63 = vpop.f32.mrf.mxu0
  %v64 = vadd.f32 %v21, %v63
  %65 = vmatmul.f32.gmra.mxu0 %v34
  %v66 = vpop.f32.mrf.mxu0
  %v67 = vadd.f32 %v21, %v66
  %68 = vdwg.mxu0
  %69 = vst [vmem:[%s3] sm:$0xff] %v58
  %70 = vst [vmem:[%s3 + $0x8] sm:$0xff] %v61
  %71 = vst [vmem:[%s3 + $0x10] sm:$0xff] %v64
  %72 = vst [vmem:[%s3 + $0x18] sm:$0xff] %v67
  // Predicated region
  $region14: #{lstm_class_forward.3} parent=0 // pred_check
    _
  $region15: #{lstm_class_forward.3} parent=0 // pred_check_branch
    %74 = sbr.rel (0) target = $region17
  $region16: #{lstm_class_forward.3} parent=0 // pred_region
    _
  $region17: #{lstm_class_forward.3} parent=0 // pred_fallthru
    _
  // Predicated region
  $region18: #{lstm_class_forward.3} parent=0 // pred_check
    _
  $region19: #{lstm_class_forward.3} parent=0 // pred_check_branch
    %76 = sbr.rel (0) target = $region21
  $region20: #{lstm_class_forward.3} parent=0 // pred_region
    _
  $region21: #{lstm_class_forward.3} parent=0 // pred_fallthru
    _

// kernel: lstm_class_forward.5
$region0: #{lstm_class_forward.5}
  #allocation0 [shape = 'u32[]', space=smem, size = 0x4, offset = 0x4, fixed_abs, tag = 'smem constant byte address 0x4 - core index']
  #allocation1 [shape = 'u32[72,128]{1,0:T(1,128)}', space=vmem, size = 0x9000, scoped, tag = 'internal scratch']
  %s0 = inlined_call_operand.vmem [shape: f32[32,32], index: 0, kind: input, shape index: {}]
  %s1 = inlined_call_operand.vmem [shape: f32[32,3], index: 1, kind: input, shape index: {}]
  %s2 = inlined_call_operand.vmem [shape: f32[1,3], index: 2, kind: input, shape index: {}]
  %s3 = inlined_call_operand.vmem [shape: f32[32,3], index: 3, kind: output, shape index: {}]
  %s4 = sld [smem:[#allocation0]]
  $region22: #{lstm_class_forward.5} parent=0
    _
  %s6 = ssub.s32 1, %s4
  %s7 = scalar_select 0, %s6, %s4
  // Predicated region
  $region2: #{lstm_class_forward.5} parent=0 // pred_check
    _
  $region3: #{lstm_class_forward.5} parent=0 // pred_check_branch
    %9 = sbr.rel (0) target = $region5
  $region4: #{lstm_class_forward.5} parent=0 // pred_region
    _
  $region5: #{lstm_class_forward.5} parent=0 // pred_fallthru
    _
  // Predicated region
  $region6: #{lstm_class_forward.5} parent=0 // pred_check
    _
  $region7: #{lstm_class_forward.5} parent=0 // pred_check_branch
    %11 = sbr.rel (0) target = $region9
  $region8: #{lstm_class_forward.5} parent=0 // pred_region
    _
  $region9: #{lstm_class_forward.5} parent=0 // pred_fallthru
    _
  // Predicated region
  $region10: #{lstm_class_forward.5} parent=0 // pred_check
    _
  $region11: #{lstm_class_forward.5} parent=0 // pred_check_branch
    %13 = sbr.rel (0) target = $region13
  $region12: #{lstm_class_forward.5} parent=0 // pred_region
    _
  $region13: #{lstm_class_forward.5} parent=0 // pred_fallthru
    _
  %v14 = vld [vmem:[%s0] sm:$0xff]
  %v15 = vld [vmem:[%s0 + $0x8] sm:$0xff]
  %v16 = vld [vmem:[%s0 + $0x10] sm:$0xff]
  %v17 = vld [vmem:[%s0 + $0x18] sm:$0xff]
  %v18 = vld [vmem:[%s1] sm:$0xff]
  %v19 = vld [vmem:[%s1 + $0x8] sm:$0xff]
  %v20 = vld [vmem:[%s1 + $0x10] sm:$0xff]
  %v21 = vld [vmem:[%s1 + $0x18] sm:$0xff]
  %v22 = vld [vmem:[%s2] sm:$0x1]
  %v24 = vperm.slane %v22, 0
  %vm26 = vcmask 261120
  %v28 = vsel %vm26, %v14, 0
  %v31 = vsel %vm26, %v15, 0
  %v34 = vsel %vm26, %v16, 0
  %v37 = vsel %vm26, %v17, 0
  %39 = vmatpush.msra.mxu0 0.0
  %40 = vmatpush.msra.mxu0 0.0
  %41 = vmatpush.msra.mxu0 0.0
  %42 = vmatpush.msra.mxu0 0.0
  %43 = vmatpush.msra.mxu0 0.0
  %44 = vmatpush.msra.mxu0 0.0
  %45 = vmatpush.msra.mxu0 0.0
  %46 = vmatpush.msra.mxu0 0.0
  %47 = vmatpush.msra.mxu0 0.0
  %48 = vmatpush.msra.mxu0 0.0
  %49 = vmatpush.msra.mxu0 0.0
  %50 = vmatpush.msra.mxu0 0.0
  %51 = vmatpush.msra.mxu0 %v21
  %52 = vmatpush.msra.mxu0 %v20
  %53 = vmatpush.msra.mxu0 %v19
  %54 = vmatpush.msra.mxu0 %v18
  %55 = vmatmul.f32.gmra.mxu0 %v28
  %v56 = vpop.f32.mrf.mxu0
  %v57 = vadd.f32 %v24, %v56
  %58 = vmatmul.f32.gmra.mxu0 %v31
  %v59 = vpop.f32.mrf.mxu0
  %v60 = vadd.f32 %v24, %v59
  %61 = vmatmul.f32.gmra.mxu0 %v34
  %v62 = vpop.f32.mrf.mxu0
  %v63 = vadd.f32 %v24, %v62
  %64 = vmatmul.f32.gmra.mxu0 %v37
  %v65 = vpop.f32.mrf.mxu0
  %v66 = vadd.f32 %v24, %v65
  %67 = vdwg.mxu0
  %vm68 = vcmask 23552
  %69 = vst.msk [vmem:[%s3] sm:$0xff] %vm68, %v57
  %70 = vst.msk [vmem:[%s3 + $0x8] sm:$0xff] %vm68, %v60
  %71 = vst.msk [vmem:[%s3 + $0x10] sm:$0xff] %vm68, %v63
  %72 = vst.msk [vmem:[%s3 + $0x18] sm:$0xff] %vm68, %v66
  // Predicated region
  $region14: #{lstm_class_forward.5} parent=0 // pred_check
    _
  $region15: #{lstm_class_forward.5} parent=0 // pred_check_branch
    %74 = sbr.rel (0) target = $region17
  $region16: #{lstm_class_forward.5} parent=0 // pred_region
    _
  $region17: #{lstm_class_forward.5} parent=0 // pred_fallthru
    _
  // Predicated region
  $region18: #{lstm_class_forward.5} parent=0 // pred_check
    _
  $region19: #{lstm_class_forward.5} parent=0 // pred_check_branch
    %76 = sbr.rel (0) target = $region21
  $region20: #{lstm_class_forward.5} parent=0 // pred_region
    _
  $region21: #{lstm_class_forward.5} parent=0 // pred_fallthru
    _

// kernel: lstm_class_forward.4
$region0: #{lstm_class_forward.4}
  #allocation0 [shape = 'u32[]', space=smem, size = 0x4, offset = 0x4, fixed_abs, tag = 'smem constant byte address 0x4 - core index']
  #allocation1 [shape = 'u32[72,128]{1,0:T(1,128)}', space=vmem, size = 0x9000, scoped, tag = 'internal scratch']
  #allocation2 [shape = 'f32[2,32]{1,0:T(2,128)}', space=vmem, size = 0x400, scoped, tag = 'scratch operand']
  #allocation3 [shape = 'f32[2,32]{1,0:T(2,128)}', space=vmem, size = 0x400, scoped, tag = 'scratch operand']
  %s0 = inlined_call_operand.vmem [shape: f32[16,2,128], index: 0, kind: input, shape index: {}]
  %s1 = inlined_call_operand.vmem [shape: f32[32,128], index: 1, kind: input, shape index: {}]
  %s2 = inlined_call_operand.vmem [shape: f32[16,2,32], index: 2, kind: output, shape index: {}]
  %s3 = sld [smem:[#allocation0]]
  $region45: #{lstm_class_forward.4} parent=0
    _
  %s5 = ssub.s32 1, %s3
  %s6 = scalar_select 0, %s5, %s3
  loop: start=0, step=1, limit=4
  $region2: #{lstm_class_forward.4} parent=0 // loop_pre_header
    _
  $region3: #{lstm_class_forward.4} parent=0 // loop_header
    %s8 = sphi 0, %s12
    %p9 = scmp.ge.s32.totalorder %s8, 4
    %s18 = sphi 0, %s20
    %s21 = sphi 0, %s18
    %s22 = sphi 0, %s21
    %s38 = sphi 0, %s22
    %s42 = sphi 0, %s42
    %s44 = sphi 0, %s42
    %s45 = sphi 0, %s44
    %s59 = sphi 0, %s45
    %s65 = sphi 0, %s67
    %s68 = sphi 0, %s65
    %s69 = sphi 0, %s68
    %s85 = sphi 0, %s69
  $region4: #{lstm_class_forward.4} parent=0 // loop_header_branch
    %11 = sbr.rel (%p9) target = $region8
  $region5: #{lstm_class_forward.4} parent=0 // loop_body
    %s13 = ssub.s32 %s8, 1
    %s14 = ssub.s32 %s8, 2
    %s15 = sadd.s32 %s8, 1
    %s16 = ssub.s32 %s8, %s15
    %p17 = scmp.eq.s32.totalorder %s16, 0
    %s19 = sadd.s32 %s18, 1
    %s20 = scalar_select %p17, %s18, %s19
    %p23 = pneg %p17
    %p24 = scmp.eq.s32.totalorder %s8, 1
    %p25 = por %p23, %p24
    %p26 = scmp.ne.s32.totalorder %s18, %s21
    %p27 = scmp.eq.s32.totalorder %s8, 0
    %p28 = por %p26, %p27
    %p29 = scmp.ne.s32.totalorder %s18, %s21
    %p30 = scmp.eq.s32.totalorder %s13, 1
    %p31 = por %p29, %p30
    %p32 = scmp.ne.s32.totalorder %s21, %s22
    %p33 = scmp.eq.s32.totalorder %s13, 0
    %p34 = por %p32, %p33
    %p35 = scmp.ne.s32.totalorder %s21, %s22
    %p36 = scmp.eq.s32.totalorder %s14, 1
    %p37 = por %p35, %p36
    %p39 = scmp.ne.s32.totalorder %s22, %s38
    %p40 = scmp.eq.s32.totalorder %s14, 0
    %p41 = por %p39, %p40
    %s43 = sadd.s32 %s42, 1
    %p46 = scmp.eq.s32.totalorder %s8, 1
    %p47 = scmp.ne.s32.totalorder %s42, %s44
    %p48 = scmp.eq.s32.totalorder %s8, 0
    %p49 = por %p47, %p48
    %p50 = scmp.ne.s32.totalorder %s42, %s44
    %p51 = scmp.eq.s32.totalorder %s13, 1
    %p52 = por %p50, %p51
    %p53 = scmp.ne.s32.totalorder %s44, %s45
    %p54 = scmp.eq.s32.totalorder %s13, 0
    %p55 = por %p53, %p54
    %p56 = scmp.ne.s32.totalorder %s44, %s45
    %p57 = scmp.eq.s32.totalorder %s14, 1
    %p58 = por %p56, %p57
    %p60 = scmp.ne.s32.totalorder %s45, %s59
    %p61 = scmp.eq.s32.totalorder %s14, 0
    %p62 = por %p60, %p61
    %s63 = ssub.s32 %s8, %s15
    %p64 = scmp.eq.s32.totalorder %s63, 0
    %s66 = sadd.s32 %s65, 1
    %s67 = scalar_select %p64, %s65, %s66
    %p70 = pneg %p64
    %p71 = scmp.eq.s32.totalorder %s8, 1
    %p72 = por %p70, %p71
    %p73 = scmp.ne.s32.totalorder %s65, %s68
    %p74 = scmp.eq.s32.totalorder %s8, 0
    %p75 = por %p73, %p74
    %p76 = scmp.ne.s32.totalorder %s65, %s68
    %p77 = scmp.eq.s32.totalorder %s13, 1
    %p78 = por %p76, %p77
    %p79 = scmp.ne.s32.totalorder %s68, %s69
    %p80 = scmp.eq.s32.totalorder %s13, 0
    %p81 = por %p79, %p80
    %p82 = scmp.ne.s32.totalorder %s68, %s69
    %p83 = scmp.eq.s32.totalorder %s14, 1
    %p84 = por %p82, %p83
    %p86 = scmp.ne.s32.totalorder %s69, %s85
    %p87 = scmp.eq.s32.totalorder %s14, 0
    %p88 = por %p86, %p87
    %p89 = scmp.le.s32.totalorder 1, %s8
    %p90 = scmp.lt.s32.totalorder %s8, 3
    %p91 = pnand %p89, %p90
    %p92 = pneg %p91
    // Predicated region
    $region9: #{lstm_class_forward.4} parent=5 // pred_check
      _
    $region10: #{lstm_class_forward.4} parent=5 // pred_check_branch
      %94 = sbr.rel (%p91) target = $region12
    $region11: #{lstm_class_forward.4} parent=5 // pred_region
      %s95 = ssub.s32 %s8, 1
      // Predicated region
      $region13: #{lstm_class_forward.4} parent=11 // pred_check
        %p96 = pneg %p55
      $region14: #{lstm_class_forward.4} parent=11 // pred_check_branch
        %98 = sbr.rel (%p96) target = $region16
      $region15: #{lstm_class_forward.4} parent=11 // pred_region
        _
      $region16: #{lstm_class_forward.4} parent=11 // pred_fallthru
        _
    $region12: #{lstm_class_forward.4} parent=5 // pred_fallthru
      _
    %p99 = scmp.lt.s32.totalorder %s8, 2
    // Predicated region
    $region17: #{lstm_class_forward.4} parent=5 // pred_check
      %p100 = pneg %p99
    $region18: #{lstm_class_forward.4} parent=5 // pred_check_branch
      %102 = sbr.rel (%p100) target = $region20
    $region19: #{lstm_class_forward.4} parent=5 // pred_region
      // Predicated region
      $region21: #{lstm_class_forward.4} parent=19 // pred_check
        %p103 = pneg %p28
      $region22: #{lstm_class_forward.4} parent=19 // pred_check_branch
        %105 = sbr.rel (%p103) target = $region24
      $region23: #{lstm_class_forward.4} parent=19 // pred_region
        %s106 = smul.u32 8, %s8
        %p107 = scmp.lt.s32.totalorder %s106, 15
        %s108 = scalar_select %p107, %s106, 15
        %s109 = smul.addr %s108, 2
        %s110 = scalar_lea.vmem %s0, %s109
        %s111 = smul.u32 8, %s8
      $region24: #{lstm_class_forward.4} parent=19 // pred_fallthru
        _
    $region20: #{lstm_class_forward.4} parent=5 // pred_fallthru
      _
    %p112 = scmp.le.s32.totalorder 1, %s8
    %p113 = scmp.lt.s32.totalorder %s8, 3
    %p114 = pnand %p112, %p113
    %p115 = pneg %p114
    // Predicated region
    $region25: #{lstm_class_forward.4} parent=5 // pred_check
      _
    $region26: #{lstm_class_forward.4} parent=5 // pred_check_branch
      %117 = sbr.rel (%p114) target = $region28
    $region27: #{lstm_class_forward.4} parent=5 // pred_region
      %s118 = ssub.s32 %s8, 1
      %s119 = smul.u32 8, %s13
      %p120 = scmp.lt.s32.totalorder %s119, 15
      %s121 = scalar_select %p120, %s119, 15
      %s122 = smul.addr %s121, 2
      %s123 = scalar_lea.vmem %s0, %s122
      %p124 = pneg %p34
      %p125 = pneg %p31
      %p126 = pneg %p55
      %p127 = pneg %p52
      %p128 = pneg %p81
      %p129 = pneg %p78
      %s130 = smul.u32 8, %s13
      %p131 = scmp.lt.s32.totalorder %s130, 15
      %s132 = scalar_select %p131, %s130, 15
      %s133 = smul.addr %s132, 2
      %s134 = scalar_lea.vmem %s2, %s133
      %s135 = smul.u32 8, %s13
      %p136 = scmp.lt.s32.totalorder %s135, 15
      %s137 = scalar_select %p136, %s135, 15
      %s138 = smul.addr %s137, 2
      %s139 = scalar_lea.vmem %s0, %s138
      %s140 = smul.u32 8, %s13
      %s141 = smul.u32 8, %s13
      %p142 = scmp.lt.s32.totalorder %s141, 15
      %s143 = scalar_select %p142, %s141, 15
      %s144 = smul.addr %s143, 2
      %s145 = scalar_lea.vmem %s2, %s144
      %s146 = smul.u32 8, %s13
      %p147 = scmp.eq.s32.totalorder %s13, 0
      // Predicated region
      $region29: #{lstm_class_forward.4} parent=27 // pred_check
        %p148 = pneg %p147
      $region30: #{lstm_class_forward.4} parent=27 // pred_check_branch
        %150 = sbr.rel (%p148) target = $region32
      $region31: #{lstm_class_forward.4} parent=27 // pred_region
        %vm151 = vcmask 254976
        %152 = vst.msk [vmem:[#allocation2] sm:$0x3] %vm151, 0.0
        %153 = vst.msk [vmem:[#allocation3] sm:$0x3] %vm151, 0.0
      $region32: #{lstm_class_forward.4} parent=27 // pred_fallthru
        _
      %v154 = vld [vmem:[%s1] sm:$0xff]
      %v155 = vld [vmem:[%s1 + $0x8] sm:$0xff]
      %v156 = vld [vmem:[%s1 + $0x10] sm:$0xff]
      %v157 = vld [vmem:[%s1 + $0x18] sm:$0xff]
      %v158 = vld [vmem:[#allocation2] sm:$0x3]
      %v159 = vld [vmem:[#allocation3] sm:$0x3]
      %v160 = vld [vmem:[%s139] sm:$0x3]
      %vm161 = vcmask 261120
      %v163 = vsel %vm161, %v158, 0
      %165 = vmatpush.msra.mxu0 0.0
      %166 = vmatpush.msra.mxu0 0.0
      %167 = vmatpush.msra.mxu0 0.0
      %168 = vmatpush.msra.mxu0 0.0
      %169 = vmatpush.msra.mxu0 0.0
      %170 = vmatpush.msra.mxu0 0.0
      %171 = vmatpush.msra.mxu0 0.0
      %172 = vmatpush.msra.mxu0 0.0
      %173 = vmatpush.msra.mxu0 0.0
      %174 = vmatpush.msra.mxu0 0.0
      %175 = vmatpush.msra.mxu0 0.0
      %176 = vmatpush.msra.mxu0 0.0
      %177 = vmatpush.msra.mxu0 %v157
      %178 = vmatpush.msra.mxu0 %v156
      %179 = vmatpush.msra.mxu0 %v155
      %180 = vmatpush.msra.mxu0 %v154
      %181 = vmatmul.f32.gmra.mxu0 %v163
      %v182 = vpop.f32.mrf.mxu0
      %v183 = vadd.f32 0.0, %v182
      %184 = vdwg.mxu0
      %v185 = vadd.f32 %v160, %v183
      %v186 = vxor.u32 %v185, 2147483648
      %v187 = vmul.f32 %v186, 1.442695
      %v188 = vpow.pop %v187
      %v189 = vadd.f32 %v188, 1.0
      %v190 = vrcp.pop %v189
      %v191 = vmul.f32 %v189, %v190
      %v192 = vsub.f32 1.0, %v191
      %v193 = vmul.f32 %v190, %v192
      %v194 = vadd.f32 %v190, %v193
      %vm195 = vweird.f32 %v189
      %vm196 = vweird.f32 %v190
      %vm197 = vmor %vm195, %vm196
      %v198 = vsel %vm197, %v190, %v194
      %v199 = vand.u32 2147483647, %v189
      %vm200 = vcmp.eq.f32.partialorder %v199, 8.507059e+37
      %v201 = vand.u32 %v189, 2147483648
      %v202 = vor.u32 1.1754944e-38, %v201
      %v203 = vsel %vm200, %v202, %v198
      %v204 = vmul.f32 1.0, %v203
      %v205 = vtanh.pop %v185
      %207 = vrot.lane.b32.xlu0 %v159, 32
      %v208 = vpop.permute.xlu0 %207
      %v210 = vmul.f32 %v204, %v208
      %212 = vrot.lane.b32.xlu0 %v205, 64
      %v213 = vpop.permute.xlu0 %212
      %v215 = vmul.f32 %v204, %v213
      %217 = vrot.lane.b32.xlu0 %v215, 32
      %v218 = vpop.permute.xlu0 %217
      %v220 = vadd.f32 %v210, %v218
      %v221 = vtanh.pop %v220
      %223 = vrot.lane.b32.xlu0 %v221, 64
      %v224 = vpop.permute.xlu0 %223
      %v226 = vmul.f32 %v204, %v224
      %228 = vrot.lane.b32.xlu0 %v226, 32
      %v229 = vpop.permute.xlu0 %228
      %vm231 = vcmask 254976
      %232 = vst.msk [vmem:[%s145] sm:$0x3] %vm231, %v229
      %s233 = scalar_lea.vmem %s139, 2
      %v234 = vld [vmem:[%s233] sm:$0x3]
      %v235 = vsel %vm161, %v229, 0
      %237 = vmatpush.msra.mxu0 0.0
      %238 = vmatpush.msra.mxu0 0.0
      %239 = vmatpush.msra.mxu0 0.0
      %240 = vmatpush.msra.mxu0 0.0
      %241 = vmatpush.msra.mxu0 0.0
      %242 = vmatpush.msra.mxu0 0.0
      %243 = vmatpush.msra.mxu0 0.0
      %244 = vmatpush.msra.mxu0 0.0
      %245 = vmatpush.msra.mxu0 0.0
      %246 = vmatpush.msra.mxu0 0.0
      %247 = vmatpush.msra.mxu0 0.0
      %248 = vmatpush.msra.mxu0 0.0
      %249 = vmatpush.msra.mxu0 %v157
      %250 = vmatpush.msra.mxu0 %v156
      %251 = vmatpush.msra.mxu0 %v155
      %252 = vmatpush.msra.mxu0 %v154
      %253 = vmatmul.f32.gmra.mxu0 %v235
      %v254 = vpop.f32.mrf.mxu0
      %v255 = vadd.f32 0.0, %v254
      %256 = vdwg.mxu0
      %v257 = vadd.f32 %v234, %v255
      %v258 = vxor.u32 %v257, 2147483648
      %v259 = vmul.f32 %v258, 1.442695
      %v260 = vpow.pop %v259
      %v261 = vadd.f32 %v260, 1.0
      %v262 = vrcp.pop %v261
      %v263 = vmul.f32 %v261, %v262
      %v264 = vsub.f32 1.0, %v263
      %v265 = vmul.f32 %v262, %v264
      %v266 = vadd.f32 %v262, %v265
      %vm267 = vweird.f32 %v261
      %vm268 = vweird.f32 %v262
      %vm269 = vmor %vm267, %vm268
      %v270 = vsel %vm269, %v262, %v266
      %v271 = vand.u32 2147483647, %v261
      %vm272 = vcmp.eq.f32.partialorder %v271, 8.507059e+37
      %v273 = vand.u32 %v261, 2147483648
      %v274 = vor.u32 1.1754944e-38, %v273
      %v275 = vsel %vm272, %v274, %v270
      %v276 = vmul.f32 1.0, %v275
      %v277 = vtanh.pop %v257
      %v278 = vmul.f32 %v276, %v220
      %280 = vrot.lane.b32.xlu0 %v277, 64
      %v281 = vpop.permute.xlu0 %280
      %v283 = vmul.f32 %v276, %v281
      %285 = vrot.lane.b32.xlu0 %v283, 32
      %v286 = vpop.permute.xlu0 %285
      %v288 = vadd.f32 %v278, %v286
      %v289 = vtanh.pop %v288
      %291 = vrot.lane.b32.xlu0 %v289, 64
      %v292 = vpop.permute.xlu0 %291
      %v294 = vmul.f32 %v276, %v292
      %296 = vrot.lane.b32.xlu0 %v294, 32
      %v297 = vpop.permute.xlu0 %296
      %s299 = scalar_lea.vmem %s145, 2
      %300 = vst.msk [vmem:[%s299] sm:$0x3] %vm231, %v297
      %s301 = scalar_lea.vmem %s139, 4
      %v302 = vld [vmem:[%s301] sm:$0x3]
      %v303 = vsel %vm161, %v297, 0
      %305 = vmatpush.msra.mxu0 0.0
      %306 = vmatpush.msra.mxu0 0.0
      %307 = vmatpush.msra.mxu0 0.0
      %308 = vmatpush.msra.mxu0 0.0
      %309 = vmatpush.msra.mxu0 0.0
      %310 = vmatpush.msra.mxu0 0.0
      %311 = vmatpush.msra.mxu0 0.0
      %312 = vmatpush.msra.mxu0 0.0
      %313 = vmatpush.msra.mxu0 0.0
      %314 = vmatpush.msra.mxu0 0.0
      %315 = vmatpush.msra.mxu0 0.0
      %316 = vmatpush.msra.mxu0 0.0
      %317 = vmatpush.msra.mxu0 %v157
      %318 = vmatpush.msra.mxu0 %v156
      %319 = vmatpush.msra.mxu0 %v155
      %320 = vmatpush.msra.mxu0 %v154
      %321 = vmatmul.f32.gmra.mxu0 %v303
      %v322 = vpop.f32.mrf.mxu0
      %v323 = vadd.f32 0.0, %v322
      %324 = vdwg.mxu0
      %v325 = vadd.f32 %v302, %v323
      %v326 = vxor.u32 %v325, 2147483648
      %v327 = vmul.f32 %v326, 1.442695
      %v328 = vpow.pop %v327
      %v329 = vadd.f32 %v328, 1.0
      %v330 = vrcp.pop %v329
      %v331 = vmul.f32 %v329, %v330
      %v332 = vsub.f32 1.0, %v331
      %v333 = vmul.f32 %v330, %v332
      %v334 = vadd.f32 %v330, %v333
      %vm335 = vweird.f32 %v329
      %vm336 = vweird.f32 %v330
      %vm337 = vmor %vm335, %vm336
      %v338 = vsel %vm337, %v330, %v334
      %v339 = vand.u32 2147483647, %v329
      %vm340 = vcmp.eq.f32.partialorder %v339, 8.507059e+37
      %v341 = vand.u32 %v329, 2147483648
      %v342 = vor.u32 1.1754944e-38, %v341
      %v343 = vsel %vm340, %v342, %v338
      %v344 = vmul.f32 1.0, %v343
      %v345 = vtanh.pop %v325
      %v346 = vmul.f32 %v344, %v288
      %348 = vrot.lane.b32.xlu0 %v345, 64
      %v349 = vpop.permute.xlu0 %348
      %v351 = vmul.f32 %v344, %v349
      %353 = vrot.lane.b32.xlu0 %v351, 32
      %v354 = vpop.permute.xlu0 %353
      %v356 = vadd.f32 %v346, %v354
      %v357 = vtanh.pop %v356
      %359 = vrot.lane.b32.xlu0 %v357, 64
      %v360 = vpop.permute.xlu0 %359
      %v362 = vmul.f32 %v344, %v360
      %364 = vrot.lane.b32.xlu0 %v362, 32
      %v365 = vpop.permute.xlu0 %364
      %s367 = scalar_lea.vmem %s145, 4
      %368 = vst.msk [vmem:[%s367] sm:$0x3] %vm231, %v365
      %s369 = scalar_lea.vmem %s139, 6
      %v370 = vld [vmem:[%s369] sm:$0x3]
      %v371 = vsel %vm161, %v365, 0
      %373 = vmatpush.msra.mxu0 0.0
      %374 = vmatpush.msra.mxu0 0.0
      %375 = vmatpush.msra.mxu0 0.0
      %376 = vmatpush.msra.mxu0 0.0
      %377 = vmatpush.msra.mxu0 0.0
      %378 = vmatpush.msra.mxu0 0.0
      %379 = vmatpush.msra.mxu0 0.0
      %380 = vmatpush.msra.mxu0 0.0
      %381 = vmatpush.msra.mxu0 0.0
      %382 = vmatpush.msra.mxu0 0.0
      %383 = vmatpush.msra.mxu0 0.0
      %384 = vmatpush.msra.mxu0 0.0
      %385 = vmatpush.msra.mxu0 %v157
      %386 = vmatpush.msra.mxu0 %v156
      %387 = vmatpush.msra.mxu0 %v155
      %388 = vmatpush.msra.mxu0 %v154
      %389 = vmatmul.f32.gmra.mxu0 %v371
      %v390 = vpop.f32.mrf.mxu0
      %v391 = vadd.f32 0.0, %v390
      %392 = vdwg.mxu0
      %v393 = vadd.f32 %v370, %v391
      %v394 = vxor.u32 %v393, 2147483648
      %v395 = vmul.f32 %v394, 1.442695
      %v396 = vpow.pop %v395
      %v397 = vadd.f32 %v396, 1.0
      %v398 = vrcp.pop %v397
      %v399 = vmul.f32 %v397, %v398
      %v400 = vsub.f32 1.0, %v399
      %v401 = vmul.f32 %v398, %v400
      %v402 = vadd.f32 %v398, %v401
      %vm403 = vweird.f32 %v397
      %vm404 = vweird.f32 %v398
      %vm405 = vmor %vm403, %vm404
      %v406 = vsel %vm405, %v398, %v402
      %v407 = vand.u32 2147483647, %v397
      %vm408 = vcmp.eq.f32.partialorder %v407, 8.507059e+37
      %v409 = vand.u32 %v397, 2147483648
      %v410 = vor.u32 1.1754944e-38, %v409
      %v411 = vsel %vm408, %v410, %v406
      %v412 = vmul.f32 1.0, %v411
      %v413 = vtanh.pop %v393
      %v414 = vmul.f32 %v412, %v356
      %416 = vrot.lane.b32.xlu0 %v413, 64
      %v417 = vpop.permute.xlu0 %416
      %v419 = vmul.f32 %v412, %v417
      %421 = vrot.lane.b32.xlu0 %v419, 32
      %v422 = vpop.permute.xlu0 %421
      %v424 = vadd.f32 %v414, %v422
      %v425 = vtanh.pop %v424
      %427 = vrot.lane.b32.xlu0 %v425, 64
      %v428 = vpop.permute.xlu0 %427
      %v430 = vmul.f32 %v412, %v428
      %432 = vrot.lane.b32.xlu0 %v430, 32
      %v433 = vpop.permute.xlu0 %432
      %s435 = scalar_lea.vmem %s145, 6
      %436 = vst.msk [vmem:[%s435] sm:$0x3] %vm231, %v433
      %s437 = scalar_lea.vmem %s139, 8
      %v438 = vld [vmem:[%s437] sm:$0x3]
      %v439 = vsel %vm161, %v433, 0
      %441 = vmatpush.msra.mxu0 0.0
      %442 = vmatpush.msra.mxu0 0.0
      %443 = vmatpush.msra.mxu0 0.0
      %444 = vmatpush.msra.mxu0 0.0
      %445 = vmatpush.msra.mxu0 0.0
      %446 = vmatpush.msra.mxu0 0.0
      %447 = vmatpush.msra.mxu0 0.0
      %448 = vmatpush.msra.mxu0 0.0
      %449 = vmatpush.msra.mxu0 0.0
      %450 = vmatpush.msra.mxu0 0.0
      %451 = vmatpush.msra.mxu0 0.0
      %452 = vmatpush.msra.mxu0 0.0
      %453 = vmatpush.msra.mxu0 %v157
      %454 = vmatpush.msra.mxu0 %v156
      %455 = vmatpush.msra.mxu0 %v155
      %456 = vmatpush.msra.mxu0 %v154
      %457 = vmatmul.f32.gmra.mxu0 %v439
      %v458 = vpop.f32.mrf.mxu0
      %v459 = vadd.f32 0.0, %v458
      %460 = vdwg.mxu0
      %v461 = vadd.f32 %v438, %v459
      %v462 = vxor.u32 %v461, 2147483648
      %v463 = vmul.f32 %v462, 1.442695
      %v464 = vpow.pop %v463
      %v465 = vadd.f32 %v464, 1.0
      %v466 = vrcp.pop %v465
      %v467 = vmul.f32 %v465, %v466
      %v468 = vsub.f32 1.0, %v467
      %v469 = vmul.f32 %v466, %v468
      %v470 = vadd.f32 %v466, %v469
      %vm471 = vweird.f32 %v465
      %vm472 = vweird.f32 %v466
      %vm473 = vmor %vm471, %vm472
      %v474 = vsel %vm473, %v466, %v470
      %v475 = vand.u32 2147483647, %v465
      %vm476 = vcmp.eq.f32.partialorder %v475, 8.507059e+37
      %v477 = vand.u32 %v465, 2147483648
      %v478 = vor.u32 1.1754944e-38, %v477
      %v479 = vsel %vm476, %v478, %v474
      %v480 = vmul.f32 1.0, %v479
      %v481 = vtanh.pop %v461
      %v482 = vmul.f32 %v480, %v424
      %484 = vrot.lane.b32.xlu0 %v481, 64
      %v485 = vpop.permute.xlu0 %484
      %v487 = vmul.f32 %v480, %v485
      %489 = vrot.lane.b32.xlu0 %v487, 32
      %v490 = vpop.permute.xlu0 %489
      %v492 = vadd.f32 %v482, %v490
      %v493 = vtanh.pop %v492
      %495 = vrot.lane.b32.xlu0 %v493, 64
      %v496 = vpop.permute.xlu0 %495
      %v498 = vmul.f32 %v480, %v496
      %500 = vrot.lane.b32.xlu0 %v498, 32
      %v501 = vpop.permute.xlu0 %500
      %s503 = scalar_lea.vmem %s145, 8
      %504 = vst.msk [vmem:[%s503] sm:$0x3] %vm231, %v501
      %s505 = scalar_lea.vmem %s139, 10
      %v506 = vld [vmem:[%s505] sm:$0x3]
      %v507 = vsel %vm161, %v501, 0
      %509 = vmatpush.msra.mxu0 0.0
      %510 = vmatpush.msra.mxu0 0.0
      %511 = vmatpush.msra.mxu0 0.0
      %512 = vmatpush.msra.mxu0 0.0
      %513 = vmatpush.msra.mxu0 0.0
      %514 = vmatpush.msra.mxu0 0.0
      %515 = vmatpush.msra.mxu0 0.0
      %516 = vmatpush.msra.mxu0 0.0
      %517 = vmatpush.msra.mxu0 0.0
      %518 = vmatpush.msra.mxu0 0.0
      %519 = vmatpush.msra.mxu0 0.0
      %520 = vmatpush.msra.mxu0 0.0
      %521 = vmatpush.msra.mxu0 %v157
      %522 = vmatpush.msra.mxu0 %v156
      %523 = vmatpush.msra.mxu0 %v155
      %524 = vmatpush.msra.mxu0 %v154
      %525 = vmatmul.f32.gmra.mxu0 %v507
      %v526 = vpop.f32.mrf.mxu0
      %v527 = vadd.f32 0.0, %v526
      %528 = vdwg.mxu0
      %v529 = vadd.f32 %v506, %v527
      %v530 = vxor.u32 %v529, 2147483648
      %v531 = vmul.f32 %v530, 1.442695
      %v532 = vpow.pop %v531
      %v533 = vadd.f32 %v532, 1.0
      %v534 = vrcp.pop %v533
      %v535 = vmul.f32 %v533, %v534
      %v536 = vsub.f32 1.0, %v535
      %v537 = vmul.f32 %v534, %v536
      %v538 = vadd.f32 %v534, %v537
      %vm539 = vweird.f32 %v533
      %vm540 = vweird.f32 %v534
      %vm541 = vmor %vm539, %vm540
      %v542 = vsel %vm541, %v534, %v538
      %v543 = vand.u32 2147483647, %v533
      %vm544 = vcmp.eq.f32.partialorder %v543, 8.507059e+37
      %v545 = vand.u32 %v533, 2147483648
      %v546 = vor.u32 1.1754944e-38, %v545
      %v547 = vsel %vm544, %v546, %v542
      %v548 = vmul.f32 1.0, %v547
      %v549 = vtanh.pop %v529
      %v550 = vmul.f32 %v548, %v492
      %552 = vrot.lane.b32.xlu0 %v549, 64
      %v553 = vpop.permute.xlu0 %552
      %v555 = vmul.f32 %v548, %v553
      %557 = vrot.lane.b32.xlu0 %v555, 32
      %v558 = vpop.permute.xlu0 %557
      %v560 = vadd.f32 %v550, %v558
      %v561 = vtanh.pop %v560
      %563 = vrot.lane.b32.xlu0 %v561, 64
      %v564 = vpop.permute.xlu0 %563
      %v566 = vmul.f32 %v548, %v564
      %568 = vrot.lane.b32.xlu0 %v566, 32
      %v569 = vpop.permute.xlu0 %568
      %s571 = scalar_lea.vmem %s145, 10
      %572 = vst.msk [vmem:[%s571] sm:$0x3] %vm231, %v569
      %s573 = scalar_lea.vmem %s139, 12
      %v574 = vld [vmem:[%s573] sm:$0x3]
      %v575 = vsel %vm161, %v569, 0
      %577 = vmatpush.msra.mxu0 0.0
      %578 = vmatpush.msra.mxu0 0.0
      %579 = vmatpush.msra.mxu0 0.0
      %580 = vmatpush.msra.mxu0 0.0
      %581 = vmatpush.msra.mxu0 0.0
      %582 = vmatpush.msra.mxu0 0.0
      %583 = vmatpush.msra.mxu0 0.0
      %584 = vmatpush.msra.mxu0 0.0
      %585 = vmatpush.msra.mxu0 0.0
      %586 = vmatpush.msra.mxu0 0.0
      %587 = vmatpush.msra.mxu0 0.0
      %588 = vmatpush.msra.mxu0 0.0
      %589 = vmatpush.msra.mxu0 %v157
      %590 = vmatpush.msra.mxu0 %v156
      %591 = vmatpush.msra.mxu0 %v155
      %592 = vmatpush.msra.mxu0 %v154
      %593 = vmatmul.f32.gmra.mxu0 %v575
      %v594 = vpop.f32.mrf.mxu0
      %v595 = vadd.f32 0.0, %v594
      %596 = vdwg.mxu0
      %v597 = vadd.f32 %v574, %v595
      %v598 = vxor.u32 %v597, 2147483648
      %v599 = vmul.f32 %v598, 1.442695
      %v600 = vpow.pop %v599
      %v601 = vadd.f32 %v600, 1.0
      %v602 = vrcp.pop %v601
      %v603 = vmul.f32 %v601, %v602
      %v604 = vsub.f32 1.0, %v603
      %v605 = vmul.f32 %v602, %v604
      %v606 = vadd.f32 %v602, %v605
      %vm607 = vweird.f32 %v601
      %vm608 = vweird.f32 %v602
      %vm609 = vmor %vm607, %vm608
      %v610 = vsel %vm609, %v602, %v606
      %v611 = vand.u32 2147483647, %v601
      %vm612 = vcmp.eq.f32.partialorder %v611, 8.507059e+37
      %v613 = vand.u32 %v601, 2147483648
      %v614 = vor.u32 1.1754944e-38, %v613
      %v615 = vsel %vm612, %v614, %v610
      %v616 = vmul.f32 1.0, %v615
      %v617 = vtanh.pop %v597
      %v618 = vmul.f32 %v616, %v560
      %620 = vrot.lane.b32.xlu0 %v617, 64
      %v621 = vpop.permute.xlu0 %620
      %v623 = vmul.f32 %v616, %v621
      %625 = vrot.lane.b32.xlu0 %v623, 32
      %v626 = vpop.permute.xlu0 %625
      %v628 = vadd.f32 %v618, %v626
      %v629 = vtanh.pop %v628
      %631 = vrot.lane.b32.xlu0 %v629, 64
      %v632 = vpop.permute.xlu0 %631
      %v634 = vmul.f32 %v616, %v632
      %636 = vrot.lane.b32.xlu0 %v634, 32
      %v637 = vpop.permute.xlu0 %636
      %s639 = scalar_lea.vmem %s145, 12
      %640 = vst.msk [vmem:[%s639] sm:$0x3] %vm231, %v637
      %s641 = scalar_lea.vmem %s139, 14
      %v642 = vld [vmem:[%s641] sm:$0x3]
      %v643 = vsel %vm161, %v637, 0
      %645 = vmatpush.msra.mxu0 0.0
      %646 = vmatpush.msra.mxu0 0.0
      %647 = vmatpush.msra.mxu0 0.0
      %648 = vmatpush.msra.mxu0 0.0
      %649 = vmatpush.msra.mxu0 0.0
      %650 = vmatpush.msra.mxu0 0.0
      %651 = vmatpush.msra.mxu0 0.0
      %652 = vmatpush.msra.mxu0 0.0
      %653 = vmatpush.msra.mxu0 0.0
      %654 = vmatpush.msra.mxu0 0.0
      %655 = vmatpush.msra.mxu0 0.0
      %656 = vmatpush.msra.mxu0 0.0
      %657 = vmatpush.msra.mxu0 %v157
      %658 = vmatpush.msra.mxu0 %v156
      %659 = vmatpush.msra.mxu0 %v155
      %660 = vmatpush.msra.mxu0 %v154
      %661 = vmatmul.f32.gmra.mxu0 %v643
      %v662 = vpop.f32.mrf.mxu0
      %v663 = vadd.f32 0.0, %v662
      %664 = vdwg.mxu0
      %v665 = vadd.f32 %v642, %v663
      %v666 = vxor.u32 %v665, 2147483648
      %v667 = vmul.f32 %v666, 1.442695
      %v668 = vpow.pop %v667
      %v669 = vadd.f32 %v668, 1.0
      %v670 = vrcp.pop %v669
      %v671 = vmul.f32 %v669, %v670
      %v672 = vsub.f32 1.0, %v671
      %v673 = vmul.f32 %v670, %v672
      %v674 = vadd.f32 %v670, %v673
      %vm675 = vweird.f32 %v669
      %vm676 = vweird.f32 %v670
      %vm677 = vmor %vm675, %vm676
      %v678 = vsel %vm677, %v670, %v674
      %v679 = vand.u32 2147483647, %v669
      %vm680 = vcmp.eq.f32.partialorder %v679, 8.507059e+37
      %v681 = vand.u32 %v669, 2147483648
      %v682 = vor.u32 1.1754944e-38, %v681
      %v683 = vsel %vm680, %v682, %v678
      %v684 = vmul.f32 1.0, %v683
      %v685 = vtanh.pop %v665
      %v686 = vmul.f32 %v684, %v628
      %688 = vrot.lane.b32.xlu0 %v685, 64
      %v689 = vpop.permute.xlu0 %688
      %v691 = vmul.f32 %v684, %v689
      %693 = vrot.lane.b32.xlu0 %v691, 32
      %v694 = vpop.permute.xlu0 %693
      %v696 = vadd.f32 %v686, %v694
      %v697 = vtanh.pop %v696
      %699 = vrot.lane.b32.xlu0 %v697, 64
      %v700 = vpop.permute.xlu0 %699
      %v702 = vmul.f32 %v684, %v700
      %704 = vrot.lane.b32.xlu0 %v702, 32
      %v705 = vpop.permute.xlu0 %704
      %s707 = scalar_lea.vmem %s145, 14
      %708 = vst.msk [vmem:[%s707] sm:$0x3] %vm231, %v705
      %709 = vst.msk [vmem:[#allocation2] sm:$0x3] %vm231, %v705
      %711 = vrot.lane.b32.xlu0 %v696, 96
      %v712 = vpop.permute.xlu0 %711
      %714 = vst.msk [vmem:[#allocation3] sm:$0x3] %vm231, %v712
      %s715 = smul.u32 8, %s13
      %p716 = scmp.lt.s32.totalorder %s715, 15
      %s717 = scalar_select %p716, %s715, 15
      %s718 = smul.addr %s717, 2
      %s719 = scalar_lea.vmem %s2, %s718
      // Predicated region
      $region33: #{lstm_class_forward.4} parent=27 // pred_check
        %p720 = pneg %p78
      $region34: #{lstm_class_forward.4} parent=27 // pred_check_branch
        %722 = sbr.rel (%p720) target = $region36
      $region35: #{lstm_class_forward.4} parent=27 // pred_region
        %s723 = smul.u32 8, %s13
      $region36: #{lstm_class_forward.4} parent=27 // pred_fallthru
        _
    $region28: #{lstm_class_forward.4} parent=5 // pred_fallthru
      _
    %p724 = scmp.le.s32.totalorder 2, %s8
    // Predicated region
    $region37: #{lstm_class_forward.4} parent=5 // pred_check
      %p725 = pneg %p724
    $region38: #{lstm_class_forward.4} parent=5 // pred_check_branch
      %727 = sbr.rel (%p725) target = $region40
    $region39: #{lstm_class_forward.4} parent=5 // pred_region
      %s728 = ssub.s32 %s8, 2
      // Predicated region
      $region41: #{lstm_class_forward.4} parent=39 // pred_check
        %p729 = pneg %p84
      $region42: #{lstm_class_forward.4} parent=39 // pred_check_branch
        %731 = sbr.rel (%p729) target = $region44
      $region43: #{lstm_class_forward.4} parent=39 // pred_region
        %s732 = smul.u32 8, %s14
        %p733 = scmp.lt.s32.totalorder %s732, 15
        %s734 = scalar_select %p733, %s732, 15
        %s735 = smul.addr %s734, 2
        %s736 = scalar_lea.vmem %s2, %s735
      $region44: #{lstm_class_forward.4} parent=39 // pred_fallthru
        _
    $region40: #{lstm_class_forward.4} parent=5 // pred_fallthru
      _
  $region6: #{lstm_class_forward.4} parent=0 // loop_footer
    %s12 = sadd.s32 1, %s8
  $region7: #{lstm_class_forward.4} parent=0 // loop_footer_branch
    %7 = sbr.rel target = $region3
  $region8: #{lstm_class_forward.4} parent=0 // loop_exit
    _

</llo_original>
